<compile_context>
chip_gen: v7x
topology: tpu7x:2x2x1
jax: 0.10.0
libtpu: 0.0.40
codegen_flags: <defaults>
</compile_context>

<pallas_src>
import math
import functools

import jax
import jax.numpy as jnp
import numpy as np
from jax import lax
from jax.experimental import pallas as pl
from jax.experimental.pallas import tpu as pltpu


_MASK = -1e30   # finite "minus infinity": exp() underflows to 0.0, no NaNs


def _layer_norm(x, gamma, beta, eps=1e-5):
    mu = jnp.mean(x, axis=-1, keepdims=True)
    xc = x - mu
    var = jnp.mean(xc * xc, axis=-1, keepdims=True)
    return xc * lax.rsqrt(var + eps) * gamma + beta          # rsqrt -> EUP


def _gelu(x):
    # The module defines its own tanh-form gelu, so this is exact (not approx).
    c = math.sqrt(2.0 / math.pi)
    return 0.5 * x * (1.0 + jnp.tanh(c * (x + 0.044715 * x * x * x)))


# ---------------------------------------------------------------------------
# Kernel
# ---------------------------------------------------------------------------
def seq_self_attn_kernel(x_ref, pad_ref, rowkeep_ref, bias_ref, wqkv_ref,
                         wout_ref, w1_ref, w2_ref, pack_ref, b1_ref, o_ref,
                         *, n_heads, strip_rows, n_strips):
    F = x_ref.shape[-1]
    M = x_ref.shape[0]                  # flattened rows handled this grid step
    H = n_heads
    Dh = F // H
    S = strip_rows
    mm = wqkv_ref.dtype                 # matmul input dtype (bf16 or f32)

    xf = x_ref[...].astype(jnp.float32)            # (M, F)
    pk = pack_ref[...]                             # (9, F) packed small params
    bq, bk, bv = pk[0:1], pk[1:2], pk[2:3]
    bout, g1, be1 = pk[3:4], pk[4:5], pk[5:6]
    b2, g2, be2 = pk[6:7], pk[7:8], pk[8:9]

    # ---- fused QKV projection: one (M,F)x(F,3F) MXU matmul ------------------
    qkv = jnp.dot(xf.astype(mm), wqkv_ref[...],
                  preferred_element_type=jnp.float32)          # (M, 3F) f32
    q = qkv[:, :F] + bq                 # 1/sqrt(Dh) pre-folded into Wq / bq
    k = qkv[:, F:2 * F] + bk
    v = qkv[:, 2 * F:] + bv

    # ---- heads -> leading batch axis (one relayout per tensor) --------------
    q3 = pltpu.einshape("mhd->hmd", q.reshape(M, H, Dh))        # (H, M, Dh)
    k3 = pltpu.einshape("mhd->hmd", k.reshape(M, H, Dh))
    v3 = pltpu.einshape("mhd->hmd", v.reshape(M, H, Dh))

    static_bias = bias_ref[...]         # (S, S) same-seq & causal, 0 / -1e30
    pad_row = pad_ref[0]                # (1, M)  1.0 = padded key
    row_keep = rowkeep_ref[0]           # (M, 1)  0.0 = zero this row's output

    # ---- attention over diagonal strips (linear in M, not quadratic) --------
    attn_strips = []
    for n in range(n_strips):
        lo = n * S
        qs = q3[:, lo:lo + S, :].astype(mm)
        ks = k3[:, lo:lo + S, :].astype(mm)
        vs = v3[:, lo:lo + S, :].astype(mm)

        key_bias = jnp.where(pad_row[:, lo:lo + S] > 0.5, _MASK, 0.0)  # (1,S)
        bias = static_bias + key_bias                                   # (S,S)

        s = jnp.einsum("hqd,hkd->hqk", qs, ks,
                       preferred_element_type=jnp.float32)      # (H, S, S)
        s = s + bias[None]
        m_ = jnp.max(s, axis=-1, keepdims=True)
        e = jnp.exp(s - m_)
        denom = jnp.sum(e, axis=-1, keepdims=True)
        p = e * pl.reciprocal(denom, approx=True)               # EUP reciprocal

        ctx = jnp.einsum("hqk,hkd->hqd", p.astype(mm), vs,
                         preferred_element_type=jnp.float32)    # (H, S, Dh)

        # Head merge folded into the output projection: accumulate
        # sum_h ctx[h] @ WoutT[h] — no 'hmd->mhd' transpose + reshape.
        proj = jnp.dot(ctx[0].astype(mm), wout_ref[0],
                       preferred_element_type=jnp.float32)      # (S, F)
        for h in range(1, H):
            proj += jnp.dot(ctx[h].astype(mm), wout_ref[h],
                            preferred_element_type=jnp.float32)

        # Rows with no causally-visible valid key (incl. fully padded
        # sequences, matching the reference's explicit zeroing).
        proj = proj * row_keep[lo:lo + S, :]
        attn_strips.append(proj + bout)

    attn = attn_strips[0] if n_strips == 1 else jnp.concatenate(attn_strips,
                                                                axis=0)

    # ---- residual + LayerNorm + feed-forward + residual + LayerNorm ---------
    x1 = xf + attn                                   # dropout == identity
    x1n = _layer_norm(x1, g1, be1)

    h1 = _gelu(jnp.dot(x1n.astype(mm), w1_ref[...],
                       preferred_element_type=jnp.float32) + b1_ref[...])
    ff = jnp.dot(h1.astype(mm), w2_ref[...],
                 preferred_element_type=jnp.float32) + b2

    o_ref[...] = _layer_norm(x1n + ff, g2, be2).astype(o_ref.dtype)


# ---------------------------------------------------------------------------
# Wrapper
# ---------------------------------------------------------------------------
def seq_self_attn(x, padding_mask, params, *, n_heads,
                  matmul_dtype=jnp.bfloat16, io_dtype=jnp.float32,
                  block_batch=None, target_m=256):
    """x: [B, T, F] float32; padding_mask: [B, T] bool (True = padded key).

    On v5e prefer target_m=128 (4x128^2 MXU) and keep matmul_dtype=bf16;
    io_dtype=jnp.bfloat16 halves HBM activation traffic (memory-bound cases).
    """
    B, T, F = x.shape
    H = n_heads
    assert F % H == 0
    Dh = F // H

    # ---- batch block: M = b_blk*T rows per grid step ------------------------
    # need (b_blk*T) % 8 == 0 unless b_blk == B; prefer a grid of >= 2 steps
    # (both v7x TensorCores get work); cap M at ~target_m (MXU saturates there
    # and non-MXU attention work grows quadratically with M).
    cands = [d for d in range(1, B + 1) if B % d == 0 and (d * T) % 8 == 0]
    tgt = max(1, target_m // max(T, 1))
    if block_batch is not None:
        b_blk = block_batch
        assert B % b_blk == 0
    elif cands:
        pref = [d for d in cands if d <= tgt and B // d >= 2]
        if pref:
            b_blk = max(pref)
        else:
            small = [d for d in cands if d <= tgt]
            b_blk = max(small) if small else min(cands)
    else:
        # TODO(synk): pad T to a multiple of 8 instead of a single-step grid.
        b_blk = B
    nb = B // b_blk
    M = b_blk * T

    # ---- diagonal attention strips (~128 rows, aligned to sequences) --------
    sps_tgt = max(1, 128 // max(T, 1))
    sps = max(d for d in range(1, b_blk + 1) if b_blk % d == 0 and d <= sps_tgt)
    S = sps * T
    n_strips = b_blk // sps

    # Static (data-independent) additive bias for one strip, built once here.
    r_np = np.arange(S)[:, None]
    c_np = np.arange(S)[None, :]
    static_bias = jnp.asarray(
        np.where(((r_np // T) == (c_np // T)) & (c_np <= r_np), 0.0, _MASK),
        jnp.float32)                                        # (S, S)

    # ---- weights: transpose / fold 1/sqrt(Dh) / cast in the wrapper ---------
    scale = 1.0 / math.sqrt(Dh)
    wqkv_t = params["wqkv"].T                               # [F, 3F]
    wqkv_t = wqkv_t.at[:, :F].multiply(scale)
    bqkv = params["bqkv"].reshape(3, F)
    bqkv = bqkv.at[0].multiply(scale)
    wqkv_t = wqkv_t.astype(matmul_dtype)
    wout3 = params["wout"].T.reshape(H, Dh, F).astype(matmul_dtype)
    w1_t = params["w1"].T.astype(matmul_dtype)              # [F, 4F]
    w2_t = params["w2"].T.astype(matmul_dtype)              # [4F, F]

    pack = jnp.concatenate(
        [bqkv,                                              # bq(scaled), bk, bv
         params["bout"].reshape(1, F),
         params["g1"].reshape(1, F), params["be1"].reshape(1, F),
         params["b2"].reshape(1, F),
         params["g2"].reshape(1, F), params["be2"].reshape(1, F)],
        axis=0).astype(jnp.float32)                         # (9, F)
    b1 = params["b1"].reshape(1, 4 * F).astype(jnp.float32)

    # ---- I/O slabs + padding-derived vectors --------------------------------
    x2d = x.reshape(B * T, F).astype(io_dtype)
    pad3 = padding_mask.astype(jnp.float32).reshape(nb, 1, M)
    # row is kept iff some causally visible key in its sequence is valid
    valid = (~padding_mask).astype(jnp.int32)
    row_keep = (jnp.cumsum(valid, axis=1) > 0).astype(jnp.float32)
    rowkeep3 = row_keep.reshape(nb, M, 1)

    # ---- VMEM budget ---------------------------------------------------------
    mm_b = jnp.dtype(matmul_dtype).itemsize
    io_b = jnp.dtype(io_dtype).itemsize
    est = (12 * F * F * mm_b + 14 * F * 4 + S * S * 4       # weights / consts
           + 2 * 2 * M * F * io_b                            # x / out (double-buf)
           + M * 3 * F * 4 + 3 * M * F * (4 + mm_b)          # qkv, q3/k3/v3
           + H * S * S * (3 * 4 + mm_b)                      # scores / exp / probs
           + M * F * 8                                       # ctx / attn / resid
           + M * 4 * F * (4 + mm_b))                         # FF hidden
    vmem_limit = int(min(64 * 2 ** 20, max(32 * 2 ** 20, int(1.5 * est))))

    inv = dict(pipeline_mode=pl.Buffered(1))                 # grid-invariant
    grid_spec = pltpu.PrefetchScalarGridSpec(
        num_scalar_prefetch=0,
        grid=(nb,),
        in_specs=[
            pl.BlockSpec((M, F), lambda b: (b, 0)),              # x (flattened)
            pl.BlockSpec((1, 1, M), lambda b: (b, 0, 0)),        # key-padded flags
            pl.BlockSpec((1, M, 1), lambda b: (b, 0, 0)),        # row-keep
            pl.BlockSpec((S, S), lambda b: (0, 0), **inv),       # static strip bias
            pl.BlockSpec((F, 3 * F), lambda b: (0, 0), **inv),   # Wqkv^T (q scaled)
            pl.BlockSpec((H, Dh, F), lambda b: (0, 0, 0), **inv),  # Wout^T (H,Dh,F)
            pl.BlockSpec((F, 4 * F), lambda b: (0, 0), **inv),   # W1^T
            pl.BlockSpec((4 * F, F), lambda b: (0, 0), **inv),   # W2^T
            pl.BlockSpec((9, F), lambda b: (0, 0), **inv),       # packed biases/LN
            pl.BlockSpec((1, 4 * F), lambda b: (0, 0), **inv),   # FF bias 1
        ],
        out_specs=pl.BlockSpec((M, F), lambda b: (b, 0)),
    )

    kernel = functools.partial(seq_self_attn_kernel, n_heads=H,
                               strip_rows=S, n_strips=n_strips)

    out2d = pl.pallas_call(
        kernel,
        out_shape=jax.ShapeDtypeStruct((B * T, F), io_dtype),
        grid_spec=grid_spec,
        compiler_params=pltpu.CompilerParams(
            dimension_semantics=("parallel",),      # batch blocks are independent
            vmem_limit_bytes=vmem_limit),
    )(x2d, pad3, rowkeep3, static_bias, wqkv_t, wout3, w1_t, w2_t, pack, b1)
    return out2d.reshape(B, T, F).astype(jnp.float32)


# ---------------------------------------------------------------------------
# Pure-JAX reference (mirrors the PyTorch forward, eval mode)
# ---------------------------------------------------------------------------
def seq_self_attn_ref(x, padding_mask, params, *, n_heads):
    B, T, F = x.shape
    Dh = F // n_heads

    qkv = x @ params["wqkv"].T + params["bqkv"][0]
    q, k, v = jnp.split(qkv, 3, axis=-1)

    def split_heads(t):
        return t.reshape(B, T, n_heads, Dh).transpose(0, 2, 1, 3)  # [B,H,T,Dh]

    q, k, v = split_heads(q), split_heads(k), split_heads(v)
    s = jnp.einsum("bhtd,bhsd->bhts", q, k) / math.sqrt(Dh)

    rows = lax.broadcasted_iota(jnp.int32, (T, T), 0)
    cols = lax.broadcasted_iota(jnp.int32, (T, T), 1)
    future = (cols > rows)[None, None]
    s = jnp.where(future, -jnp.inf, s)
    s = jnp.where(padding_mask[:, None, None, :], -jnp.inf, s)

    w = jax.nn.softmax(s, axis=-1)
    w = jnp.where(jnp.all(padding_mask, axis=-1)[:, None, None, None], 0.0, w)

    a = jnp.einsum("bhts,bhsd->bhtd", w, v).transpose(0, 2, 1, 3).reshape(B, T, F)
    a = a @ params["wout"].T + params["bout"][0]

    x1 = x + a
    x1n = _layer_norm(x1, params["g1"][0], params["be1"][0])

    h = _gelu(x1n @ params["w1"].T + params["b1"][0])
    f = h @ params["w2"].T + params["b2"][0]
    return _layer_norm(x1n + f, params["g2"][0], params["be2"][0])


# ---------------------------------------------------------------------------
# Main
# ---------------------------------------------------------------------------
if __name__ == "__main__":
    B, T, F, H = 2, 8, 32, 4

    key = jax.random.PRNGKey(0)
    keys = jax.random.split(key, 10)

    params = {
        "wqkv": 0.02 * jax.random.normal(keys[0], (3 * F, F), jnp.float32),
        "bqkv": 0.01 * jax.random.normal(keys[1], (1, 3 * F), jnp.float32),
        "wout": 0.02 * jax.random.normal(keys[2], (F, F), jnp.float32),
        "bout": 0.01 * jax.random.normal(keys[3], (1, F), jnp.float32),
        "g1":   jnp.ones((1, F), jnp.float32),
        "be1":  jnp.zeros((1, F), jnp.float32),
        "w1":   0.02 * jax.random.normal(keys[4], (4 * F, F), jnp.float32),
        "b1":   0.01 * jax.random.normal(keys[5], (1, 4 * F), jnp.float32),
        "w2":   0.02 * jax.random.normal(keys[6], (F, 4 * F), jnp.float32),
        "b2":   0.01 * jax.random.normal(keys[7], (1, F), jnp.float32),
        "g2":   jnp.ones((1, F), jnp.float32),
        "be2":  jnp.zeros((1, F), jnp.float32),
    }

    x = jax.random.normal(keys[8], (B, T, F), jnp.float32)
    # padding mask: True = padded key position (batch 1 has last 2 tokens padded)
    padding_mask = jnp.zeros((B, T), jnp.bool_).at[1, -2:].set(True)

    ref = seq_self_attn_ref(x, padding_mask, params, n_heads=H)

    # f32 matmul path — tight check.
    out_f32 = seq_self_attn(x, padding_mask, params, n_heads=H,
                            matmul_dtype=jnp.float32)
    out_f32 = jax.block_until_ready(out_f32)
    np.testing.assert_allclose(np.asarray(out_f32), np.asarray(ref),
                               rtol=5e-3, atol=5e-3)

    # bf16 matmul inputs / f32 accumulation (fast path) — looser check.
    out_bf16 = seq_self_attn(x, padding_mask, params, n_heads=H,
                             matmul_dtype=jnp.bfloat16)
    out_bf16 = jax.block_until_ready(out_bf16)
    np.testing.assert_allclose(np.asarray(out_bf16), np.asarray(ref),
                               rtol=3e-2, atol=3e-2)

    print("KERNEL_OK")
</pallas_src>

<mosaic_0001>
module attributes {stable_mosaic.version = 11 : i64} {
  func.func @seq_self_attn_kernel(%arg0: i32, %arg1: memref<8x32xf32, #tpu.memory_space<vmem>>, %arg2: memref<1x1x8xf32, #tpu.memory_space<vmem>>, %arg3: memref<1x8x1xf32, #tpu.memory_space<vmem>>, %arg4: memref<8x8xf32, #tpu.memory_space<vmem>>, %arg5: memref<32x96xf32, #tpu.memory_space<vmem>>, %arg6: memref<4x8x32xf32, #tpu.memory_space<vmem>>, %arg7: memref<32x128xf32, #tpu.memory_space<vmem>>, %arg8: memref<128x32xf32, #tpu.memory_space<vmem>>, %arg9: memref<9x32xf32, #tpu.memory_space<vmem>>, %arg10: memref<1x128xf32, #tpu.memory_space<vmem>>, %arg11: memref<8x32xf32, #tpu.memory_space<vmem>>) attributes {dimension_semantics = [#tpu.dimension_semantics<parallel>], iteration_bounds = array<i64: 2>, scalar_prefetch = 0 : i64, scratch_operands = 0 : i64, tpu.core_type = #tpu.core_type<tc>, window_params = [{transform_indices = @transform_0, window_bounds = array<i64: 8, 32>}, {transform_indices = @transform_1, window_bounds = array<i64: 1, 1, 8>}, {transform_indices = @transform_2, window_bounds = array<i64: 1, 8, 1>}, {pipeline_mode = #tpu.pipeline_mode<synchronous>, transform_indices = @transform_3, window_bounds = array<i64: 8, 8>}, {pipeline_mode = #tpu.pipeline_mode<synchronous>, transform_indices = @transform_4, window_bounds = array<i64: 32, 96>}, {pipeline_mode = #tpu.pipeline_mode<synchronous>, transform_indices = @transform_5, window_bounds = array<i64: 4, 8, 32>}, {pipeline_mode = #tpu.pipeline_mode<synchronous>, transform_indices = @transform_6, window_bounds = array<i64: 32, 128>}, {pipeline_mode = #tpu.pipeline_mode<synchronous>, transform_indices = @transform_7, window_bounds = array<i64: 128, 32>}, {pipeline_mode = #tpu.pipeline_mode<synchronous>, transform_indices = @transform_8, window_bounds = array<i64: 9, 32>}, {pipeline_mode = #tpu.pipeline_mode<synchronous>, transform_indices = @transform_9, window_bounds = array<i64: 1, 128>}, {transform_indices = @transform_10, window_bounds = array<i64: 8, 32>}]} {
    %c0 = arith.constant 0 : index
    %c0_0 = arith.constant 0 : index
    %0 = vector.load %arg1[%c0, %c0_0] : memref<8x32xf32, #tpu.memory_space<vmem>>, vector<8x32xf32>
    %c0_1 = arith.constant 0 : index
    %c0_2 = arith.constant 0 : index
    %1 = vector.load %arg9[%c0_1, %c0_2] : memref<9x32xf32, #tpu.memory_space<vmem>>, vector<9x32xf32>
    %2 = vector.extract_strided_slice %1 {offsets = [0, 0], sizes = [1, 32], strides = [1, 1]} : vector<9x32xf32> to vector<1x32xf32>
    %3 = vector.extract_strided_slice %1 {offsets = [1, 0], sizes = [1, 32], strides = [1, 1]} : vector<9x32xf32> to vector<1x32xf32>
    %4 = vector.extract_strided_slice %1 {offsets = [2, 0], sizes = [1, 32], strides = [1, 1]} : vector<9x32xf32> to vector<1x32xf32>
    %5 = vector.extract_strided_slice %1 {offsets = [3, 0], sizes = [1, 32], strides = [1, 1]} : vector<9x32xf32> to vector<1x32xf32>
    %6 = vector.extract_strided_slice %1 {offsets = [4, 0], sizes = [1, 32], strides = [1, 1]} : vector<9x32xf32> to vector<1x32xf32>
    %7 = vector.extract_strided_slice %1 {offsets = [5, 0], sizes = [1, 32], strides = [1, 1]} : vector<9x32xf32> to vector<1x32xf32>
    %8 = vector.extract_strided_slice %1 {offsets = [6, 0], sizes = [1, 32], strides = [1, 1]} : vector<9x32xf32> to vector<1x32xf32>
    %9 = vector.extract_strided_slice %1 {offsets = [7, 0], sizes = [1, 32], strides = [1, 1]} : vector<9x32xf32> to vector<1x32xf32>
    %10 = vector.extract_strided_slice %1 {offsets = [8, 0], sizes = [1, 32], strides = [1, 1]} : vector<9x32xf32> to vector<1x32xf32>
    %c0_3 = arith.constant 0 : index
    %c0_4 = arith.constant 0 : index
    %11 = vector.load %arg5[%c0_3, %c0_4] : memref<32x96xf32, #tpu.memory_space<vmem>>, vector<32x96xf32>
    %cst = arith.constant dense<0.000000e+00> : vector<8x96xf32>
    %12 = tpu.matmul %0, %11, %cst {dimension_numbers = #tpu.dot_dimension_numbers<[1], [0], [0], [1], [0, 0, 1, 1], [], []>} : vector<8x32xf32>, vector<32x96xf32>, vector<8x96xf32> -> vector<8x96xf32>
    %13 = vector.extract_strided_slice %12 {offsets = [0, 0], sizes = [8, 32], strides = [1, 1]} : vector<8x96xf32> to vector<8x32xf32>
    %14 = vector.broadcast %2 : vector<1x32xf32> to vector<8x32xf32>
    %15 = arith.addf %13, %14 : vector<8x32xf32>
    %16 = vector.extract_strided_slice %12 {offsets = [0, 32], sizes = [8, 32], strides = [1, 1]} : vector<8x96xf32> to vector<8x32xf32>
    %17 = vector.broadcast %3 : vector<1x32xf32> to vector<8x32xf32>
    %18 = arith.addf %16, %17 : vector<8x32xf32>
    %19 = vector.extract_strided_slice %12 {offsets = [0, 64], sizes = [8, 32], strides = [1, 1]} : vector<8x96xf32> to vector<8x32xf32>
    %20 = vector.broadcast %4 : vector<1x32xf32> to vector<8x32xf32>
    %21 = arith.addf %19, %20 : vector<8x32xf32>
    %22 = vector.shape_cast %15 : vector<8x32xf32> to vector<8x4x8xf32>
    %23 = tpu.transpose %22, [1, 0, 2] : vector<8x4x8xf32> -> vector<4x8x8xf32>
    %24 = vector.shape_cast %18 : vector<8x32xf32> to vector<8x4x8xf32>
    %25 = tpu.transpose %24, [1, 0, 2] : vector<8x4x8xf32> -> vector<4x8x8xf32>
    %26 = vector.shape_cast %21 : vector<8x32xf32> to vector<8x4x8xf32>
    %27 = tpu.transpose %26, [1, 0, 2] : vector<8x4x8xf32> -> vector<4x8x8xf32>
    %c0_5 = arith.constant 0 : index
    %c0_6 = arith.constant 0 : index
    %28 = vector.load %arg4[%c0_5, %c0_6] : memref<8x8xf32, #tpu.memory_space<vmem>>, vector<8x8xf32>
    %c0_7 = arith.constant 0 : index
    %c0_8 = arith.constant 0 : index
    %c0_9 = arith.constant 0 : index
    %29 = vector.load %arg2[%c0_7, %c0_8, %c0_9] : memref<1x1x8xf32, #tpu.memory_space<vmem>>, vector<1x1x8xf32>
    %30 = vector.shape_cast %29 : vector<1x1x8xf32> to vector<1x8xf32>
    %c0_10 = arith.constant 0 : index
    %c0_11 = arith.constant 0 : index
    %c0_12 = arith.constant 0 : index
    %31 = vector.load %arg3[%c0_10, %c0_11, %c0_12] : memref<1x8x1xf32, #tpu.memory_space<vmem>>, vector<1x8x1xf32>
    %32 = vector.shape_cast %31 : vector<1x8x1xf32> to vector<8x1xf32>
    %cst_13 = arith.constant 5.000000e-01 : f32
    %33 = vector.broadcast %cst_13 : f32 to vector<1x8xf32>
    %34 = arith.cmpf ogt, %30, %33 : vector<1x8xf32>
    %cst_14 = arith.constant -1.000000e+30 : f32
    %cst_15 = arith.constant 0.000000e+00 : f32
    %35 = vector.broadcast %cst_14 : f32 to vector<1x8xf32>
    %36 = vector.broadcast %cst_15 : f32 to vector<1x8xf32>
    %37 = arith.select %34, %35, %36 : vector<1x8xi1>, vector<1x8xf32>
    %38 = vector.broadcast %37 : vector<1x8xf32> to vector<8x8xf32>
    %39 = arith.addf %28, %38 : vector<8x8xf32>
    "tpu.trace_start"() <{level = 10 : i32, message = "hqd,hkd->hqk"}> : () -> ()
    %cst_16 = arith.constant dense<0.000000e+00> : vector<4x8x8xf32>
    %40 = tpu.matmul %23, %25, %cst_16 {dimension_numbers = #tpu.dot_dimension_numbers<[2], [2], [1], [1], [0, 0, 0, 1, 1, 1], [0], [0]>} : vector<4x8x8xf32>, vector<4x8x8xf32>, vector<4x8x8xf32> -> vector<4x8x8xf32>
    "tpu.trace_stop"() : () -> ()
    %41 = vector.shape_cast %39 : vector<8x8xf32> to vector<1x8x8xf32>
    %42 = vector.broadcast %41 : vector<1x8x8xf32> to vector<4x8x8xf32>
    %43 = arith.addf %40, %42 : vector<4x8x8xf32>
    %cst_17 = arith.constant dense<0xFF800000> : vector<4x8xf32>
    %44 = vector.multi_reduction <maximumf>, %43, %cst_17 [2] : vector<4x8x8xf32> to vector<4x8xf32>
    %45 = vector.shape_cast %44 : vector<4x8xf32> to vector<4x8x1xf32>
    %46 = vector.broadcast %45 : vector<4x8x1xf32> to vector<4x8x8xf32>
    %47 = arith.subf %43, %46 : vector<4x8x8xf32>
    %48 = math.exp %47 : vector<4x8x8xf32>
    %cst_18 = arith.constant dense<0.000000e+00> : vector<4x8xf32>
    %49 = vector.multi_reduction <add>, %48, %cst_18 [2] : vector<4x8x8xf32> to vector<4x8xf32>
    %50 = vector.shape_cast %49 : vector<4x8xf32> to vector<4x8x1xf32>
    %51 = tpu.reciprocal %50 {approx = true} : vector<4x8x1xf32> -> vector<4x8x1xf32>
    %52 = vector.broadcast %51 : vector<4x8x1xf32> to vector<4x8x8xf32>
    %53 = arith.mulf %48, %52 : vector<4x8x8xf32>
    "tpu.trace_start"() <{level = 10 : i32, message = "hqk,hkd->hqd"}> : () -> ()
    %cst_19 = arith.constant dense<0.000000e+00> : vector<4x8x8xf32>
    %54 = tpu.matmul %53, %27, %cst_19 {dimension_numbers = #tpu.dot_dimension_numbers<[2], [1], [1], [2], [0, 0, 0, 1, 1, 2], [0], [0]>} : vector<4x8x8xf32>, vector<4x8x8xf32>, vector<4x8x8xf32> -> vector<4x8x8xf32>
    "tpu.trace_stop"() : () -> ()
    %55 = vector.extract_strided_slice %54 {offsets = [0, 0, 0], sizes = [1, 8, 8], strides = [1, 1, 1]} : vector<4x8x8xf32> to vector<1x8x8xf32>
    %56 = vector.shape_cast %55 : vector<1x8x8xf32> to vector<8x8xf32>
    %c0_20 = arith.constant 0 : index
    %c0_21 = arith.constant 0 : index
    %c0_22 = arith.constant 0 : index
    %57 = vector.load %arg6[%c0_20, %c0_21, %c0_22] : memref<4x8x32xf32, #tpu.memory_space<vmem>>, vector<1x8x32xf32>
    %58 = vector.shape_cast %57 : vector<1x8x32xf32> to vector<8x32xf32>
    %cst_23 = arith.constant dense<0.000000e+00> : vector<8x32xf32>
    %59 = tpu.matmul %56, %58, %cst_23 {dimension_numbers = #tpu.dot_dimension_numbers<[1], [0], [0], [1], [0, 0, 1, 1], [], []>} : vector<8x8xf32>, vector<8x32xf32>, vector<8x32xf32> -> vector<8x32xf32>
    %60 = vector.extract_strided_slice %54 {offsets = [1, 0, 0], sizes = [1, 8, 8], strides = [1, 1, 1]} : vector<4x8x8xf32> to vector<1x8x8xf32>
    %61 = vector.shape_cast %60 : vector<1x8x8xf32> to vector<8x8xf32>
    %c1 = arith.constant 1 : index
    %c0_24 = arith.constant 0 : index
    %c0_25 = arith.constant 0 : index
    %62 = vector.load %arg6[%c1, %c0_24, %c0_25] : memref<4x8x32xf32, #tpu.memory_space<vmem>>, vector<1x8x32xf32>
    %63 = vector.shape_cast %62 : vector<1x8x32xf32> to vector<8x32xf32>
    %cst_26 = arith.constant dense<0.000000e+00> : vector<8x32xf32>
    %64 = tpu.matmul %61, %63, %cst_26 {dimension_numbers = #tpu.dot_dimension_numbers<[1], [0], [0], [1], [0, 0, 1, 1], [], []>} : vector<8x8xf32>, vector<8x32xf32>, vector<8x32xf32> -> vector<8x32xf32>
    %65 = arith.addf %59, %64 : vector<8x32xf32>
    %66 = vector.extract_strided_slice %54 {offsets = [2, 0, 0], sizes = [1, 8, 8], strides = [1, 1, 1]} : vector<4x8x8xf32> to vector<1x8x8xf32>
    %67 = vector.shape_cast %66 : vector<1x8x8xf32> to vector<8x8xf32>
    %c2 = arith.constant 2 : index
    %c0_27 = arith.constant 0 : index
    %c0_28 = arith.constant 0 : index
    %68 = vector.load %arg6[%c2, %c0_27, %c0_28] : memref<4x8x32xf32, #tpu.memory_space<vmem>>, vector<1x8x32xf32>
    %69 = vector.shape_cast %68 : vector<1x8x32xf32> to vector<8x32xf32>
    %cst_29 = arith.constant dense<0.000000e+00> : vector<8x32xf32>
    %70 = tpu.matmul %67, %69, %cst_29 {dimension_numbers = #tpu.dot_dimension_numbers<[1], [0], [0], [1], [0, 0, 1, 1], [], []>} : vector<8x8xf32>, vector<8x32xf32>, vector<8x32xf32> -> vector<8x32xf32>
    %71 = arith.addf %65, %70 : vector<8x32xf32>
    %72 = vector.extract_strided_slice %54 {offsets = [3, 0, 0], sizes = [1, 8, 8], strides = [1, 1, 1]} : vector<4x8x8xf32> to vector<1x8x8xf32>
    %73 = vector.shape_cast %72 : vector<1x8x8xf32> to vector<8x8xf32>
    %c3 = arith.constant 3 : index
    %c0_30 = arith.constant 0 : index
    %c0_31 = arith.constant 0 : index
    %74 = vector.load %arg6[%c3, %c0_30, %c0_31] : memref<4x8x32xf32, #tpu.memory_space<vmem>>, vector<1x8x32xf32>
    %75 = vector.shape_cast %74 : vector<1x8x32xf32> to vector<8x32xf32>
    %cst_32 = arith.constant dense<0.000000e+00> : vector<8x32xf32>
    %76 = tpu.matmul %73, %75, %cst_32 {dimension_numbers = #tpu.dot_dimension_numbers<[1], [0], [0], [1], [0, 0, 1, 1], [], []>} : vector<8x8xf32>, vector<8x32xf32>, vector<8x32xf32> -> vector<8x32xf32>
    %77 = arith.addf %71, %76 : vector<8x32xf32>
    %78 = vector.broadcast %32 : vector<8x1xf32> to vector<8x32xf32>
    %79 = arith.mulf %77, %78 : vector<8x32xf32>
    %80 = vector.broadcast %5 : vector<1x32xf32> to vector<8x32xf32>
    %81 = arith.addf %79, %80 : vector<8x32xf32>
    %82 = arith.addf %0, %81 : vector<8x32xf32>
    %cst_33 = arith.constant dense<0.000000e+00> : vector<8xf32>
    %83 = vector.multi_reduction <add>, %82, %cst_33 [1] : vector<8x32xf32> to vector<8xf32>
    %84 = vector.shape_cast %83 : vector<8xf32> to vector<8x1xf32>
    %cst_34 = arith.constant 3.200000e+01 : f32
    %85 = vector.broadcast %cst_34 : f32 to vector<8x1xf32>
    %86 = arith.divf %84, %85 : vector<8x1xf32>
    %87 = vector.broadcast %86 : vector<8x1xf32> to vector<8x32xf32>
    %88 = arith.subf %82, %87 : vector<8x32xf32>
    %89 = arith.mulf %88, %88 : vector<8x32xf32>
    %cst_35 = arith.constant dense<0.000000e+00> : vector<8xf32>
    %90 = vector.multi_reduction <add>, %89, %cst_35 [1] : vector<8x32xf32> to vector<8xf32>
    %91 = vector.shape_cast %90 : vector<8xf32> to vector<8x1xf32>
    %cst_36 = arith.constant 3.200000e+01 : f32
    %92 = vector.broadcast %cst_36 : f32 to vector<8x1xf32>
    %93 = arith.divf %91, %92 : vector<8x1xf32>
    %cst_37 = arith.constant 9.99999974E-6 : f32
    %94 = vector.broadcast %cst_37 : f32 to vector<8x1xf32>
    %95 = arith.addf %93, %94 : vector<8x1xf32>
    %96 = math.rsqrt %95 : vector<8x1xf32>
    %97 = vector.broadcast %96 : vector<8x1xf32> to vector<8x32xf32>
    %98 = arith.mulf %88, %97 : vector<8x32xf32>
    %99 = vector.broadcast %6 : vector<1x32xf32> to vector<8x32xf32>
    %100 = arith.mulf %98, %99 : vector<8x32xf32>
    %101 = vector.broadcast %7 : vector<1x32xf32> to vector<8x32xf32>
    %102 = arith.addf %100, %101 : vector<8x32xf32>
    %c0_38 = arith.constant 0 : index
    %c0_39 = arith.constant 0 : index
    %103 = vector.load %arg7[%c0_38, %c0_39] : memref<32x128xf32, #tpu.memory_space<vmem>>, vector<32x128xf32>
    %cst_40 = arith.constant dense<0.000000e+00> : vector<8x128xf32>
    %104 = tpu.matmul %102, %103, %cst_40 {dimension_numbers = #tpu.dot_dimension_numbers<[1], [0], [0], [1], [0, 0, 1, 1], [], []>} : vector<8x32xf32>, vector<32x128xf32>, vector<8x128xf32> -> vector<8x128xf32>
    %c0_41 = arith.constant 0 : index
    %c0_42 = arith.constant 0 : index
    %105 = vector.load %arg10[%c0_41, %c0_42] : memref<1x128xf32, #tpu.memory_space<vmem>>, vector<1x128xf32>
    %106 = vector.broadcast %105 : vector<1x128xf32> to vector<8x128xf32>
    %107 = arith.addf %104, %106 : vector<8x128xf32>
    %cst_43 = arith.constant 5.000000e-01 : f32
    %108 = vector.broadcast %cst_43 : f32 to vector<8x128xf32>
    %109 = arith.mulf %108, %107 : vector<8x128xf32>
    %cst_44 = arith.constant 4.471500e-02 : f32
    %110 = vector.broadcast %cst_44 : f32 to vector<8x128xf32>
    %111 = arith.mulf %110, %107 : vector<8x128xf32>
    %112 = arith.mulf %111, %107 : vector<8x128xf32>
    %113 = arith.mulf %112, %107 : vector<8x128xf32>
    %114 = arith.addf %107, %113 : vector<8x128xf32>
    %cst_45 = arith.constant 0.797884583 : f32
    %115 = vector.broadcast %cst_45 : f32 to vector<8x128xf32>
    %116 = arith.mulf %115, %114 : vector<8x128xf32>
    %117 = math.tanh %116 : vector<8x128xf32>
    %cst_46 = arith.constant 1.000000e+00 : f32
    %118 = vector.broadcast %cst_46 : f32 to vector<8x128xf32>
    %119 = arith.addf %118, %117 : vector<8x128xf32>
    %120 = arith.mulf %109, %119 : vector<8x128xf32>
    %c0_47 = arith.constant 0 : index
    %c0_48 = arith.constant 0 : index
    %121 = vector.load %arg8[%c0_47, %c0_48] : memref<128x32xf32, #tpu.memory_space<vmem>>, vector<128x32xf32>
    %cst_49 = arith.constant dense<0.000000e+00> : vector<8x32xf32>
    %122 = tpu.matmul %120, %121, %cst_49 {dimension_numbers = #tpu.dot_dimension_numbers<[1], [0], [0], [1], [0, 0, 1, 1], [], []>} : vector<8x128xf32>, vector<128x32xf32>, vector<8x32xf32> -> vector<8x32xf32>
    %123 = vector.broadcast %8 : vector<1x32xf32> to vector<8x32xf32>
    %124 = arith.addf %122, %123 : vector<8x32xf32>
    %125 = arith.addf %102, %124 : vector<8x32xf32>
    %cst_50 = arith.constant dense<0.000000e+00> : vector<8xf32>
    %126 = vector.multi_reduction <add>, %125, %cst_50 [1] : vector<8x32xf32> to vector<8xf32>
    %127 = vector.shape_cast %126 : vector<8xf32> to vector<8x1xf32>
    %cst_51 = arith.constant 3.200000e+01 : f32
    %128 = vector.broadcast %cst_51 : f32 to vector<8x1xf32>
    %129 = arith.divf %127, %128 : vector<8x1xf32>
    %130 = vector.broadcast %129 : vector<8x1xf32> to vector<8x32xf32>
    %131 = arith.subf %125, %130 : vector<8x32xf32>
    %132 = arith.mulf %131, %131 : vector<8x32xf32>
    %cst_52 = arith.constant dense<0.000000e+00> : vector<8xf32>
    %133 = vector.multi_reduction <add>, %132, %cst_52 [1] : vector<8x32xf32> to vector<8xf32>
    %134 = vector.shape_cast %133 : vector<8xf32> to vector<8x1xf32>
    %cst_53 = arith.constant 3.200000e+01 : f32
    %135 = vector.broadcast %cst_53 : f32 to vector<8x1xf32>
    %136 = arith.divf %134, %135 : vector<8x1xf32>
    %cst_54 = arith.constant 9.99999974E-6 : f32
    %137 = vector.broadcast %cst_54 : f32 to vector<8x1xf32>
    %138 = arith.addf %136, %137 : vector<8x1xf32>
    %139 = math.rsqrt %138 : vector<8x1xf32>
    %140 = vector.broadcast %139 : vector<8x1xf32> to vector<8x32xf32>
    %141 = arith.mulf %131, %140 : vector<8x32xf32>
    %142 = vector.broadcast %9 : vector<1x32xf32> to vector<8x32xf32>
    %143 = arith.mulf %141, %142 : vector<8x32xf32>
    %144 = vector.broadcast %10 : vector<1x32xf32> to vector<8x32xf32>
    %145 = arith.addf %143, %144 : vector<8x32xf32>
    %c0_55 = arith.constant 0 : index
    %c0_56 = arith.constant 0 : index
    %146 = vector.load %arg11[%c0_55, %c0_56] : memref<8x32xf32, #tpu.memory_space<vmem>>, vector<8x32xf32>
    tpu.vector_store %arg11[%c0_55, %c0_56], %145 {strides = array<i32>} : memref<8x32xf32, #tpu.memory_space<vmem>>, vector<8x32xf32>,
    return
  }
  func.func @transform_0(%arg0: i32) -> (i32, i32) {
    %c0_i32 = arith.constant 0 : i32
    %c0_i32_0 = arith.constant 0 : i32
    return %arg0, %c0_i32 : i32, i32
  }
  func.func @transform_1(%arg0: i32) -> (i32, i32, i32) {
    %c0_i32 = arith.constant 0 : i32
    %c0_i32_0 = arith.constant 0 : i32
    %c0_i32_1 = arith.constant 0 : i32
    return %arg0, %c0_i32, %c0_i32_0 : i32, i32, i32
  }
  func.func @transform_2(%arg0: i32) -> (i32, i32, i32) {
    %c0_i32 = arith.constant 0 : i32
    %c0_i32_0 = arith.constant 0 : i32
    %c0_i32_1 = arith.constant 0 : i32
    return %arg0, %c0_i32, %c0_i32_0 : i32, i32, i32
  }
  func.func @transform_3(%arg0: i32) -> (i32, i32) {
    %c0_i32 = arith.constant 0 : i32
    %c0_i32_0 = arith.constant 0 : i32
    %c0_i32_1 = arith.constant 0 : i32
    return %c0_i32, %c0_i32_0 : i32, i32
  }
  func.func @transform_4(%arg0: i32) -> (i32, i32) {
    %c0_i32 = arith.constant 0 : i32
    %c0_i32_0 = arith.constant 0 : i32
    %c0_i32_1 = arith.constant 0 : i32
    return %c0_i32, %c0_i32_0 : i32, i32
  }
  func.func @transform_5(%arg0: i32) -> (i32, i32, i32) {
    %c0_i32 = arith.constant 0 : i32
    %c0_i32_0 = arith.constant 0 : i32
    %c0_i32_1 = arith.constant 0 : i32
    %c0_i32_2 = arith.constant 0 : i32
    return %c0_i32, %c0_i32_0, %c0_i32_1 : i32, i32, i32
  }
  func.func @transform_6(%arg0: i32) -> (i32, i32) {
    %c0_i32 = arith.constant 0 : i32
    %c0_i32_0 = arith.constant 0 : i32
    %c0_i32_1 = arith.constant 0 : i32
    return %c0_i32, %c0_i32_0 : i32, i32
  }
  func.func @transform_7(%arg0: i32) -> (i32, i32) {
    %c0_i32 = arith.constant 0 : i32
    %c0_i32_0 = arith.constant 0 : i32
    %c0_i32_1 = arith.constant 0 : i32
    return %c0_i32, %c0_i32_0 : i32, i32
  }
  func.func @transform_8(%arg0: i32) -> (i32, i32) {
    %c0_i32 = arith.constant 0 : i32
    %c0_i32_0 = arith.constant 0 : i32
    %c0_i32_1 = arith.constant 0 : i32
    return %c0_i32, %c0_i32_0 : i32, i32
  }
  func.func @transform_9(%arg0: i32) -> (i32, i32) {
    %c0_i32 = arith.constant 0 : i32
    %c0_i32_0 = arith.constant 0 : i32
    %c0_i32_1 = arith.constant 0 : i32
    return %c0_i32, %c0_i32_0 : i32, i32
  }
  func.func @transform_10(%arg0: i32) -> (i32, i32) {
    %c0_i32 = arith.constant 0 : i32
    %c0_i32_0 = arith.constant 0 : i32
    return %arg0, %c0_i32 : i32, i32
  }
}

</mosaic_0001>

<llo_original>
// kernel: tpu_custom_call.1
$region0: #{tpu_custom_call.1}
  #allocation0 [shape = 'u32[]', space=smem, size = 0x4, offset = 0x4, fixed_abs, tag = 'smem constant byte address 0x4 - core index']
  #allocation1 [shape = 'u32[144,128]{1,0:T(1,128)}', space=vmem, size = 0x12000, scoped, tag = 'internal scratch']
  %s0 = inlined_call_operand.vmem [shape: f32[16,32], index: 0, kind: input, shape index: {}]
  %s1 = inlined_call_operand.vmem [shape: f32[2,1,8], index: 1, kind: input, shape index: {}]
  %s2 = inlined_call_operand.vmem [shape: f32[2,8,1], index: 2, kind: input, shape index: {}]
  %s3 = inlined_call_operand.vmem [shape: f32[8,8], index: 3, kind: input, shape index: {}]
  %s4 = inlined_call_operand.vmem [shape: f32[32,96], index: 4, kind: input, shape index: {}]
  %s5 = inlined_call_operand.vmem [shape: f32[4,8,32], index: 5, kind: input, shape index: {}]
  %s6 = inlined_call_operand.vmem [shape: f32[32,128], index: 6, kind: input, shape index: {}]
  %s7 = inlined_call_operand.vmem [shape: f32[128,32], index: 7, kind: input, shape index: {}]
  %s8 = inlined_call_operand.vmem [shape: f32[9,32], index: 8, kind: input, shape index: {}]
  %s9 = inlined_call_operand.vmem [shape: f32[1,128], index: 9, kind: input, shape index: {}]
  %s10 = inlined_call_operand.hbm [shape: f32[16,32], index: 10, kind: output, shape index: {}]
  %s11 = sld [smem:[#allocation0]]
  $region73: #{tpu_custom_call.1} parent=0
    _
  %s13 = ssub.s32 1, %s11
  %s14 = scalar_select 0, %s13, %s11
  $region1: #{tpu_custom_call.1} parent=0
    #allocation2 [shape = 'u8[8192]{0}', space=vmem, size = 0x2000, scoped, tag = 'output window, operand 0']
    #allocation3 [shape = 's32[2]{0}', space=sflag, size = 0x8, scoped, tag = 'scoped memory for tpu_custom_call.1']
    %15 = vsyncpa [#allocation3], 0
    %s16 = scalar_lea.sflag [#allocation3], 1
    %17 = vsyncpa %s16, 0
    loop: start=0, step=1, limit=4
    $region2: #{tpu_custom_call.1} parent=1 // loop_pre_header
      _
    $region3: #{tpu_custom_call.1} parent=1 // loop_header
      %s19 = sphi 0, %s23
      %p20 = scmp.ge.s32.totalorder %s19, 4
      %s29 = sphi 0, %s31
      %s32 = sphi 0, %s29
      %s33 = sphi 0, %s32
      %s49 = sphi 0, %s33
      %s55 = sphi 0, %s57
      %s58 = sphi 0, %s55
      %s59 = sphi 0, %s58
      %s75 = sphi 0, %s59
      %s81 = sphi 0, %s83
      %s84 = sphi 0, %s81
      %s85 = sphi 0, %s84
      %s101 = sphi 0, %s85
      %s105 = sphi 0, %s105
      %s107 = sphi 0, %s105
      %s108 = sphi 0, %s107
      %s122 = sphi 0, %s108
      %s126 = sphi 0, %s126
      %s128 = sphi 0, %s126
      %s129 = sphi 0, %s128
      %s143 = sphi 0, %s129
      %s147 = sphi 0, %s147
      %s149 = sphi 0, %s147
      %s150 = sphi 0, %s149
      %s164 = sphi 0, %s150
      %s168 = sphi 0, %s168
      %s170 = sphi 0, %s168
      %s171 = sphi 0, %s170
      %s185 = sphi 0, %s171
      %s189 = sphi 0, %s189
      %s191 = sphi 0, %s189
      %s192 = sphi 0, %s191
      %s206 = sphi 0, %s192
      %s210 = sphi 0, %s210
      %s212 = sphi 0, %s210
      %s213 = sphi 0, %s212
      %s227 = sphi 0, %s213
      %s231 = sphi 0, %s231
      %s233 = sphi 0, %s231
      %s234 = sphi 0, %s233
      %s248 = sphi 0, %s234
      %s254 = sphi 0, %s256
      %s257 = sphi 0, %s254
      %s258 = sphi 0, %s257
      %s274 = sphi 0, %s258
    $region4: #{tpu_custom_call.1} parent=1 // loop_header_branch
      %22 = sbr.rel (%p20) target = $region8
    $region5: #{tpu_custom_call.1} parent=1 // loop_body
      %s24 = ssub.s32 %s19, 1
      %s25 = ssub.s32 %s19, 2
      %s26 = sadd.s32 %s19, 1
      %s27 = ssub.s32 %s19, %s26
      %p28 = scmp.eq.s32.totalorder %s27, 0
      %s30 = sadd.s32 %s29, 1
      %s31 = scalar_select %p28, %s29, %s30
      %p34 = pneg %p28
      %p35 = scmp.eq.s32.totalorder %s19, 1
      %p36 = por %p34, %p35
      %p37 = scmp.ne.s32.totalorder %s29, %s32
      %p38 = scmp.eq.s32.totalorder %s19, 0
      %p39 = por %p37, %p38
      %p40 = scmp.ne.s32.totalorder %s29, %s32
      %p41 = scmp.eq.s32.totalorder %s24, 1
      %p42 = por %p40, %p41
      %p43 = scmp.ne.s32.totalorder %s32, %s33
      %p44 = scmp.eq.s32.totalorder %s24, 0
      %p45 = por %p43, %p44
      %p46 = scmp.ne.s32.totalorder %s32, %s33
      %p47 = scmp.eq.s32.totalorder %s25, 1
      %p48 = por %p46, %p47
      %p50 = scmp.ne.s32.totalorder %s33, %s49
      %p51 = scmp.eq.s32.totalorder %s25, 0
      %p52 = por %p50, %p51
      %s53 = ssub.s32 %s19, %s26
      %p54 = scmp.eq.s32.totalorder %s53, 0
      %s56 = sadd.s32 %s55, 1
      %s57 = scalar_select %p54, %s55, %s56
      %p60 = pneg %p54
      %p61 = scmp.eq.s32.totalorder %s19, 1
      %p62 = por %p60, %p61
      %p63 = scmp.ne.s32.totalorder %s55, %s58
      %p64 = scmp.eq.s32.totalorder %s19, 0
      %p65 = por %p63, %p64
      %p66 = scmp.ne.s32.totalorder %s55, %s58
      %p67 = scmp.eq.s32.totalorder %s24, 1
      %p68 = por %p66, %p67
      %p69 = scmp.ne.s32.totalorder %s58, %s59
      %p70 = scmp.eq.s32.totalorder %s24, 0
      %p71 = por %p69, %p70
      %p72 = scmp.ne.s32.totalorder %s58, %s59
      %p73 = scmp.eq.s32.totalorder %s25, 1
      %p74 = por %p72, %p73
      %p76 = scmp.ne.s32.totalorder %s59, %s75
      %p77 = scmp.eq.s32.totalorder %s25, 0
      %p78 = por %p76, %p77
      %s79 = ssub.s32 %s19, %s26
      %p80 = scmp.eq.s32.totalorder %s79, 0
      %s82 = sadd.s32 %s81, 1
      %s83 = scalar_select %p80, %s81, %s82
      %p86 = pneg %p80
      %p87 = scmp.eq.s32.totalorder %s19, 1
      %p88 = por %p86, %p87
      %p89 = scmp.ne.s32.totalorder %s81, %s84
      %p90 = scmp.eq.s32.totalorder %s19, 0
      %p91 = por %p89, %p90
      %p92 = scmp.ne.s32.totalorder %s81, %s84
      %p93 = scmp.eq.s32.totalorder %s24, 1
      %p94 = por %p92, %p93
      %p95 = scmp.ne.s32.totalorder %s84, %s85
      %p96 = scmp.eq.s32.totalorder %s24, 0
      %p97 = por %p95, %p96
      %p98 = scmp.ne.s32.totalorder %s84, %s85
      %p99 = scmp.eq.s32.totalorder %s25, 1
      %p100 = por %p98, %p99
      %p102 = scmp.ne.s32.totalorder %s85, %s101
      %p103 = scmp.eq.s32.totalorder %s25, 0
      %p104 = por %p102, %p103
      %s106 = sadd.s32 %s105, 1
      %p109 = scmp.eq.s32.totalorder %s19, 1
      %p110 = scmp.ne.s32.totalorder %s105, %s107
      %p111 = scmp.eq.s32.totalorder %s19, 0
      %p112 = por %p110, %p111
      %p113 = scmp.ne.s32.totalorder %s105, %s107
      %p114 = scmp.eq.s32.totalorder %s24, 1
      %p115 = por %p113, %p114
      %p116 = scmp.ne.s32.totalorder %s107, %s108
      %p117 = scmp.eq.s32.totalorder %s24, 0
      %p118 = por %p116, %p117
      %p119 = scmp.ne.s32.totalorder %s107, %s108
      %p120 = scmp.eq.s32.totalorder %s25, 1
      %p121 = por %p119, %p120
      %p123 = scmp.ne.s32.totalorder %s108, %s122
      %p124 = scmp.eq.s32.totalorder %s25, 0
      %p125 = por %p123, %p124
      %s127 = sadd.s32 %s126, 1
      %p130 = scmp.eq.s32.totalorder %s19, 1
      %p131 = scmp.ne.s32.totalorder %s126, %s128
      %p132 = scmp.eq.s32.totalorder %s19, 0
      %p133 = por %p131, %p132
      %p134 = scmp.ne.s32.totalorder %s126, %s128
      %p135 = scmp.eq.s32.totalorder %s24, 1
      %p136 = por %p134, %p135
      %p137 = scmp.ne.s32.totalorder %s128, %s129
      %p138 = scmp.eq.s32.totalorder %s24, 0
      %p139 = por %p137, %p138
      %p140 = scmp.ne.s32.totalorder %s128, %s129
      %p141 = scmp.eq.s32.totalorder %s25, 1
      %p142 = por %p140, %p141
      %p144 = scmp.ne.s32.totalorder %s129, %s143
      %p145 = scmp.eq.s32.totalorder %s25, 0
      %p146 = por %p144, %p145
      %s148 = sadd.s32 %s147, 1
      %p151 = scmp.eq.s32.totalorder %s19, 1
      %p152 = scmp.ne.s32.totalorder %s147, %s149
      %p153 = scmp.eq.s32.totalorder %s19, 0
      %p154 = por %p152, %p153
      %p155 = scmp.ne.s32.totalorder %s147, %s149
      %p156 = scmp.eq.s32.totalorder %s24, 1
      %p157 = por %p155, %p156
      %p158 = scmp.ne.s32.totalorder %s149, %s150
      %p159 = scmp.eq.s32.totalorder %s24, 0
      %p160 = por %p158, %p159
      %p161 = scmp.ne.s32.totalorder %s149, %s150
      %p162 = scmp.eq.s32.totalorder %s25, 1
      %p163 = por %p161, %p162
      %p165 = scmp.ne.s32.totalorder %s150, %s164
      %p166 = scmp.eq.s32.totalorder %s25, 0
      %p167 = por %p165, %p166
      %s169 = sadd.s32 %s168, 1
      %p172 = scmp.eq.s32.totalorder %s19, 1
      %p173 = scmp.ne.s32.totalorder %s168, %s170
      %p174 = scmp.eq.s32.totalorder %s19, 0
      %p175 = por %p173, %p174
      %p176 = scmp.ne.s32.totalorder %s168, %s170
      %p177 = scmp.eq.s32.totalorder %s24, 1
      %p178 = por %p176, %p177
      %p179 = scmp.ne.s32.totalorder %s170, %s171
      %p180 = scmp.eq.s32.totalorder %s24, 0
      %p181 = por %p179, %p180
      %p182 = scmp.ne.s32.totalorder %s170, %s171
      %p183 = scmp.eq.s32.totalorder %s25, 1
      %p184 = por %p182, %p183
      %p186 = scmp.ne.s32.totalorder %s171, %s185
      %p187 = scmp.eq.s32.totalorder %s25, 0
      %p188 = por %p186, %p187
      %s190 = sadd.s32 %s189, 1
      %p193 = scmp.eq.s32.totalorder %s19, 1
      %p194 = scmp.ne.s32.totalorder %s189, %s191
      %p195 = scmp.eq.s32.totalorder %s19, 0
      %p196 = por %p194, %p195
      %p197 = scmp.ne.s32.totalorder %s189, %s191
      %p198 = scmp.eq.s32.totalorder %s24, 1
      %p199 = por %p197, %p198
      %p200 = scmp.ne.s32.totalorder %s191, %s192
      %p201 = scmp.eq.s32.totalorder %s24, 0
      %p202 = por %p200, %p201
      %p203 = scmp.ne.s32.totalorder %s191, %s192
      %p204 = scmp.eq.s32.totalorder %s25, 1
      %p205 = por %p203, %p204
      %p207 = scmp.ne.s32.totalorder %s192, %s206
      %p208 = scmp.eq.s32.totalorder %s25, 0
      %p209 = por %p207, %p208
      %s211 = sadd.s32 %s210, 1
      %p214 = scmp.eq.s32.totalorder %s19, 1
      %p215 = scmp.ne.s32.totalorder %s210, %s212
      %p216 = scmp.eq.s32.totalorder %s19, 0
      %p217 = por %p215, %p216
      %p218 = scmp.ne.s32.totalorder %s210, %s212
      %p219 = scmp.eq.s32.totalorder %s24, 1
      %p220 = por %p218, %p219
      %p221 = scmp.ne.s32.totalorder %s212, %s213
      %p222 = scmp.eq.s32.totalorder %s24, 0
      %p223 = por %p221, %p222
      %p224 = scmp.ne.s32.totalorder %s212, %s213
      %p225 = scmp.eq.s32.totalorder %s25, 1
      %p226 = por %p224, %p225
      %p228 = scmp.ne.s32.totalorder %s213, %s227
      %p229 = scmp.eq.s32.totalorder %s25, 0
      %p230 = por %p228, %p229
      %s232 = sadd.s32 %s231, 1
      %p235 = scmp.eq.s32.totalorder %s19, 1
      %p236 = scmp.ne.s32.totalorder %s231, %s233
      %p237 = scmp.eq.s32.totalorder %s19, 0
      %p238 = por %p236, %p237
      %p239 = scmp.ne.s32.totalorder %s231, %s233
      %p240 = scmp.eq.s32.totalorder %s24, 1
      %p241 = por %p239, %p240
      %p242 = scmp.ne.s32.totalorder %s233, %s234
      %p243 = scmp.eq.s32.totalorder %s24, 0
      %p244 = por %p242, %p243
      %p245 = scmp.ne.s32.totalorder %s233, %s234
      %p246 = scmp.eq.s32.totalorder %s25, 1
      %p247 = por %p245, %p246
      %p249 = scmp.ne.s32.totalorder %s234, %s248
      %p250 = scmp.eq.s32.totalorder %s25, 0
      %p251 = por %p249, %p250
      %s252 = ssub.s32 %s19, %s26
      %p253 = scmp.eq.s32.totalorder %s252, 0
      %s255 = sadd.s32 %s254, 1
      %s256 = scalar_select %p253, %s254, %s255
      %p259 = pneg %p253
      %p260 = scmp.eq.s32.totalorder %s19, 1
      %p261 = por %p259, %p260
      %p262 = scmp.ne.s32.totalorder %s254, %s257
      %p263 = scmp.eq.s32.totalorder %s19, 0
      %p264 = por %p262, %p263
      %p265 = scmp.ne.s32.totalorder %s254, %s257
      %p266 = scmp.eq.s32.totalorder %s24, 1
      %p267 = por %p265, %p266
      %p268 = scmp.ne.s32.totalorder %s257, %s258
      %p269 = scmp.eq.s32.totalorder %s24, 0
      %p270 = por %p268, %p269
      %p271 = scmp.ne.s32.totalorder %s257, %s258
      %p272 = scmp.eq.s32.totalorder %s25, 1
      %p273 = por %p271, %p272
      %p275 = scmp.ne.s32.totalorder %s258, %s274
      %p276 = scmp.eq.s32.totalorder %s25, 0
      %p277 = por %p275, %p276
      %p278 = scmp.le.s32.totalorder 1, %s19
      %p279 = scmp.lt.s32.totalorder %s19, 3
      %p280 = pnand %p278, %p279
      %p281 = pneg %p280
      // Predicated region
      $region9: #{tpu_custom_call.1} parent=5 // pred_check
        _
      $region10: #{tpu_custom_call.1} parent=5 // pred_check_branch
        %283 = sbr.rel (%p280) target = $region12
      $region11: #{tpu_custom_call.1} parent=5 // pred_region
        %s284 = ssub.s32 %s19, 1
        // Predicated region
        $region13: #{tpu_custom_call.1} parent=11 // pred_check
          %p285 = pneg %p118
        $region14: #{tpu_custom_call.1} parent=11 // pred_check_branch
          %287 = sbr.rel (%p285) target = $region16
        $region15: #{tpu_custom_call.1} parent=11 // pred_region
          _
        $region16: #{tpu_custom_call.1} parent=11 // pred_fallthru
          _
        // Predicated region
        $region17: #{tpu_custom_call.1} parent=11 // pred_check
          %p288 = pneg %p139
        $region18: #{tpu_custom_call.1} parent=11 // pred_check_branch
          %290 = sbr.rel (%p288) target = $region20
        $region19: #{tpu_custom_call.1} parent=11 // pred_region
          _
        $region20: #{tpu_custom_call.1} parent=11 // pred_fallthru
          _
        // Predicated region
        $region21: #{tpu_custom_call.1} parent=11 // pred_check
          %p291 = pneg %p160
        $region22: #{tpu_custom_call.1} parent=11 // pred_check_branch
          %293 = sbr.rel (%p291) target = $region24
        $region23: #{tpu_custom_call.1} parent=11 // pred_region
          _
        $region24: #{tpu_custom_call.1} parent=11 // pred_fallthru
          _
        // Predicated region
        $region25: #{tpu_custom_call.1} parent=11 // pred_check
          %p294 = pneg %p181
        $region26: #{tpu_custom_call.1} parent=11 // pred_check_branch
          %296 = sbr.rel (%p294) target = $region28
        $region27: #{tpu_custom_call.1} parent=11 // pred_region
          _
        $region28: #{tpu_custom_call.1} parent=11 // pred_fallthru
          _
        // Predicated region
        $region29: #{tpu_custom_call.1} parent=11 // pred_check
          %p297 = pneg %p202
        $region30: #{tpu_custom_call.1} parent=11 // pred_check_branch
          %299 = sbr.rel (%p297) target = $region32
        $region31: #{tpu_custom_call.1} parent=11 // pred_region
          _
        $region32: #{tpu_custom_call.1} parent=11 // pred_fallthru
          _
        // Predicated region
        $region33: #{tpu_custom_call.1} parent=11 // pred_check
          %p300 = pneg %p223
        $region34: #{tpu_custom_call.1} parent=11 // pred_check_branch
          %302 = sbr.rel (%p300) target = $region36
        $region35: #{tpu_custom_call.1} parent=11 // pred_region
          _
        $region36: #{tpu_custom_call.1} parent=11 // pred_fallthru
          _
        // Predicated region
        $region37: #{tpu_custom_call.1} parent=11 // pred_check
          %p303 = pneg %p244
        $region38: #{tpu_custom_call.1} parent=11 // pred_check_branch
          %305 = sbr.rel (%p303) target = $region40
        $region39: #{tpu_custom_call.1} parent=11 // pred_region
          _
        $region40: #{tpu_custom_call.1} parent=11 // pred_fallthru
          _
      $region12: #{tpu_custom_call.1} parent=5 // pred_fallthru
        _
      %p306 = scmp.lt.s32.totalorder %s19, 2
      // Predicated region
      $region41: #{tpu_custom_call.1} parent=5 // pred_check
        %p307 = pneg %p306
      $region42: #{tpu_custom_call.1} parent=5 // pred_check_branch
        %309 = sbr.rel (%p307) target = $region44
      $region43: #{tpu_custom_call.1} parent=5 // pred_region
        // Predicated region
        $region45: #{tpu_custom_call.1} parent=43 // pred_check
          %p310 = pneg %p39
        $region46: #{tpu_custom_call.1} parent=43 // pred_check_branch
          %312 = sbr.rel (%p310) target = $region48
        $region47: #{tpu_custom_call.1} parent=43 // pred_region
          %p313 = scmp.lt.s32.totalorder %s19, 1
          %s314 = scalar_select %p313, %s19, 1
          %s315 = smul.addr %s314, 8
          %s316 = scalar_lea.vmem %s0, %s315
        $region48: #{tpu_custom_call.1} parent=43 // pred_fallthru
          _
        // Predicated region
        $region49: #{tpu_custom_call.1} parent=43 // pred_check
          %p317 = pneg %p65
        $region50: #{tpu_custom_call.1} parent=43 // pred_check_branch
          %319 = sbr.rel (%p317) target = $region52
        $region51: #{tpu_custom_call.1} parent=43 // pred_region
          %p320 = scmp.lt.s32.totalorder %s19, 1
          %s321 = scalar_select %p320, %s19, 1
          %s322 = scalar_lea.vmem %s1, %s321
        $region52: #{tpu_custom_call.1} parent=43 // pred_fallthru
          _
        // Predicated region
        $region53: #{tpu_custom_call.1} parent=43 // pred_check
          %p323 = pneg %p91
        $region54: #{tpu_custom_call.1} parent=43 // pred_check_branch
          %325 = sbr.rel (%p323) target = $region56
        $region55: #{tpu_custom_call.1} parent=43 // pred_region
          %p326 = scmp.lt.s32.totalorder %s19, 1
          %s327 = scalar_select %p326, %s19, 1
          %s328 = smul.addr %s327, 8
          %s329 = scalar_lea.vmem %s2, %s328
        $region56: #{tpu_custom_call.1} parent=43 // pred_fallthru
          _
      $region44: #{tpu_custom_call.1} parent=5 // pred_fallthru
        _
      %p330 = scmp.le.s32.totalorder 1, %s19
      %p331 = scmp.lt.s32.totalorder %s19, 3
      %p332 = pnand %p330, %p331
      %p333 = pneg %p332
      // Predicated region
      $region57: #{tpu_custom_call.1} parent=5 // pred_check
        _
      $region58: #{tpu_custom_call.1} parent=5 // pred_check_branch
        %335 = sbr.rel (%p332) target = $region60
      $region59: #{tpu_custom_call.1} parent=5 // pred_region
        %s336 = ssub.s32 %s19, 1
        %p337 = scmp.lt.s32.totalorder %s24, 1
        %s338 = scalar_select %p337, %s24, 1
        %s339 = smul.addr %s338, 8
        %s340 = scalar_lea.vmem %s0, %s339
        %p341 = pneg %p45
        %p342 = pneg %p42
        %p343 = scmp.lt.s32.totalorder %s24, 1
        %s344 = scalar_select %p343, %s24, 1
        %s345 = scalar_lea.vmem %s1, %s344
        %p346 = pneg %p71
        %p347 = pneg %p68
        %p348 = scmp.lt.s32.totalorder %s24, 1
        %s349 = scalar_select %p348, %s24, 1
        %s350 = smul.addr %s349, 8
        %s351 = scalar_lea.vmem %s2, %s350
        %p352 = pneg %p97
        %p353 = pneg %p94
        %p354 = pneg %p118
        %p355 = pneg %p115
        %p356 = pneg %p139
        %p357 = pneg %p136
        %p358 = pneg %p160
        %p359 = pneg %p157
        %p360 = pneg %p181
        %p361 = pneg %p178
        %p362 = pneg %p202
        %p363 = pneg %p199
        %p364 = pneg %p223
        %p365 = pneg %p220
        %p366 = pneg %p244
        %p367 = pneg %p241
        %p368 = pneg %p270
        %p369 = pneg %p267
        %s370 = sand.u32 %s257, 1
        %s371 = scalar_lea.sflag [#allocation3], %s370
        %s372 = sand.u32 %s257, 1
        %s373 = smul.addr %s372, 8
        %s374 = scalar_lea.vmem [#allocation2], %s373
        %p375 = scmp.lt.s32.totalorder %s24, 1
        %s376 = scalar_select %p375, %s24, 1
        %s377 = smul.addr %s376, 8
        %s378 = scalar_lea.vmem %s0, %s377
        %p379 = scmp.lt.s32.totalorder %s24, 1
        %s380 = scalar_select %p379, %s24, 1
        %s381 = scalar_lea.vmem %s1, %s380
        %p382 = scmp.lt.s32.totalorder %s24, 1
        %s383 = scalar_select %p382, %s24, 1
        %s384 = smul.addr %s383, 8
        %s385 = scalar_lea.vmem %s2, %s384
        %v386 = vld [vmem:[%s378] sm:$0xff]
        %v387 = vld [vmem:[%s8] sm:$0xff]
        %v388 = vld [vmem:[%s8 + $0x8] sm:$0x1]
        %v389 = vld [vmem:[%s4] sm:$0xff]
        %v390 = vld [vmem:[%s4 + $0x8] sm:$0xff]
        %v391 = vld [vmem:[%s4 + $0x10] sm:$0xff]
        %v392 = vld [vmem:[%s4 + $0x18] sm:$0xff]
        %vm393 = vcmask 261120
        %v395 = vsel %vm393, %v386, 0
        %397 = vmatprep.subr.mxu0 0.0
        %398 = vmatpush1.msra.mxu0 %v389
        %399 = vmatprep.subr.mxu0 0.0
        %400 = vmatpush1.msra.mxu0 %v390
        %401 = vmatprep.subr.mxu0 0.0
        %402 = vmatpush1.msra.mxu0 %v391
        %403 = vmatprep.subr.mxu0 0.0
        %404 = vmatpush1.msra.mxu0 %v392
        %405 = vmatprep.subr.mxu0 0.0
        %406 = vmatpush1.msra.mxu0 0.0
        %407 = vmatprep.subr.mxu0 0.0
        %408 = vmatpush1.msra.mxu0 0.0
        %409 = vmatprep.subr.mxu0 0.0
        %410 = vmatpush1.msra.mxu0 0.0
        %411 = vmatprep.subr.mxu0 0.0
        %412 = vmatpush1.msra.mxu0 0.0
        %413 = vmatprep.subr.mxu0 0.0
        %414 = vmatpush1.msra.mxu0 0.0
        %415 = vmatprep.subr.mxu0 0.0
        %416 = vmatpush1.msra.mxu0 0.0
        %417 = vmatprep.subr.mxu0 0.0
        %418 = vmatpush1.msra.mxu0 0.0
        %419 = vmatprep.subr.mxu0 0.0
        %420 = vmatpush1.msra.mxu0 0.0
        %421 = vmatprep.subr.mxu0 0.0
        %422 = vmatpush1.msra.mxu0 0.0
        %423 = vmatprep.subr.mxu0 0.0
        %424 = vmatpush1.msra.mxu0 0.0
        %425 = vmatprep.subr.mxu0 0.0
        %426 = vmatpush1.msra.mxu0 0.0
        %427 = vmatprep.subr.mxu0 0.0
        %428 = vmatpush1.msra.mxu0 0.0
        %429 = vmatprep.subr.mxu0 0.0
        %430 = vmatpush1.msra.mxu0 0.0
        %431 = vmatprep.subr.mxu0 0.0
        %432 = vmatpush1.msra.mxu0 0.0
        %433 = vmatprep.subr.mxu0 0.0
        %434 = vmatpush1.msra.mxu0 0.0
        %435 = vmatprep.subr.mxu0 0.0
        %436 = vmatpush1.msra.mxu0 0.0
        %437 = vmatprep.subr.mxu0 0.0
        %438 = vmatpush1.msra.mxu0 0.0
        %439 = vmatprep.subr.mxu0 0.0
        %440 = vmatpush1.msra.mxu0 0.0
        %441 = vmatprep.subr.mxu0 0.0
        %442 = vmatpush1.msra.mxu0 0.0
        %443 = vmatprep.subr.mxu0 0.0
        %444 = vmatpush1.msra.mxu0 0.0
        %445 = vmatprep.subr.mxu0 0.0
        %446 = vmatpush1.msra.mxu0 0.0
        %447 = vmatprep.subr.mxu0 0.0
        %448 = vmatpush1.msra.mxu0 0.0
        %449 = vmatprep.subr.mxu0 0.0
        %450 = vmatpush1.msra.mxu0 0.0
        %451 = vmatprep.subr.mxu0 0.0
        %452 = vmatpush1.msra.mxu0 0.0
        %453 = vmatprep.subr.mxu0 0.0
        %454 = vmatpush1.msra.mxu0 0.0
        %455 = vmatprep.subr.mxu0 0.0
        %456 = vmatpush1.msra.mxu0 0.0
        %457 = vmatprep.subr.mxu0 0.0
        %458 = vmatpush1.msra.mxu0 0.0
        %459 = vmatprep.subr.mxu0 0.0
        %460 = vmatpush1.msra.mxu0 0.0
        %461 = vmatprep.mubr.f32.mxu0 0.0
        %462 = vmatmul.mubr.f32.gmra.mrb[0].mxu0 %v395
        %v463 = vpop.f32.mrb[0].mxu0
        %v464 = vadd.f32 0.0, %v463
        %v465 = vpop.f32.mrb[0].mxu0
        %466 = vdwg.mxu0
        %v467 = vlaneseq
        %v468 = vshrl.u32 %v467, 7
        %v469 = vsub.s32 0, %v468
        %v470 = vrot.slane %v387, %v469
        %v471 = vadd.f32 %v464, %v470
        %v472 = vlaneseq
        %v473 = vshrl.u32 %v472, 7
        %v474 = vsub.s32 1, %v473
        %v475 = vrot.slane %v387, %v474
        %477 = vrot.lane.b32.xlu0 %v475, 32
        %v478 = vpop.permute.xlu0 %477
        %v480 = vadd.f32 %v464, %v478
        %v481 = vlaneseq
        %v482 = vshrl.u32 %v481, 7
        %v483 = vsub.s32 2, %v482
        %v484 = vrot.slane %v387, %v483
        %486 = vrot.lane.b32.xlu0 %v484, 64
        %v487 = vpop.permute.xlu0 %486
        %v489 = vadd.f32 %v464, %v487
        %491 = vrot.lane.b32.xlu0 %v471, 120
        %v492 = vpop.permute.xlu0 %491
        %494 = vrot.lane.b32.xlu0 %v471, 112
        %v495 = vpop.permute.xlu0 %494
        %497 = vrot.lane.b32.xlu0 %v471, 104
        %v498 = vpop.permute.xlu0 %497
        %v500 = vcombine.low %v471, %v495
        %v501 = vcombine.high %v471, %v495
        %v503 = vunpack.c.l.s4 1983009808
        %v504 = vunpack.c.0.s8 %v503
        %v505 = vlaneseq
        %v506 = vshrl.u32 %v505, 7
        %v507 = vsub.s32 %v504, %v506
        %v508 = vrot.slane %v500, %v507
        %v510 = vunpack.c.l.s4 1983009808
        %v511 = vunpack.c.0.s8 %v510
        %v512 = vlaneseq
        %v513 = vshrl.u32 %v512, 7
        %v514 = vsub.s32 %v511, %v513
        %v515 = vrot.slane %v501, %v514
        %v516 = vcombine.low %v492, %v498
        %v517 = vcombine.high %v492, %v498
        %v519 = vunpack.c.l.s4 1983009808
        %v520 = vunpack.c.0.s8 %v519
        %v521 = vlaneseq
        %v522 = vshrl.u32 %v521, 7
        %v523 = vsub.s32 %v520, %v522
        %v524 = vrot.slane %v516, %v523
        %v526 = vunpack.c.l.s4 1983009808
        %v527 = vunpack.c.0.s8 %v526
        %v528 = vlaneseq
        %v529 = vshrl.u32 %v528, 7
        %v530 = vsub.s32 %v527, %v529
        %v531 = vrot.slane %v517, %v530
        %v532 = vcombine.low %v508, %v524
        %v533 = vcombine.high %v508, %v524
        %v535 = vunpack.c.l.s4 1934713408
        %v536 = vunpack.c.0.s8 %v535
        %v537 = vlaneseq
        %v538 = vshrl.u32 %v537, 7
        %v539 = vsub.s32 %v536, %v538
        %v540 = vrot.slane %v532, %v539
        %v542 = vunpack.c.l.s4 1934713408
        %v543 = vunpack.c.0.s8 %v542
        %v544 = vlaneseq
        %v545 = vshrl.u32 %v544, 7
        %v546 = vsub.s32 %v543, %v545
        %v547 = vrot.slane %v533, %v546
        %v548 = vcombine.low %v515, %v531
        %v549 = vcombine.high %v515, %v531
        %v551 = vunpack.c.l.s4 1934713408
        %v552 = vunpack.c.0.s8 %v551
        %v553 = vlaneseq
        %v554 = vshrl.u32 %v553, 7
        %v555 = vsub.s32 %v552, %v554
        %v556 = vrot.slane %v548, %v555
        %v558 = vunpack.c.l.s4 1934713408
        %v559 = vunpack.c.0.s8 %v558
        %v560 = vlaneseq
        %v561 = vshrl.u32 %v560, 7
        %v562 = vsub.s32 %v559, %v561
        %v563 = vrot.slane %v549, %v562
        %v564 = vcombine.high %v540, 0.0
        %v565 = vcombine.high %v547, 0.0
        %v566 = vcombine.high %v556, 0.0
        %v567 = vcombine.high %v563, 0.0
        %v568 = vcombine.low %v540, %v547
        %v570 = vunpack.c.l.s4 1983009808
        %v571 = vunpack.c.0.s8 %v570
        %v572 = vlaneseq
        %v573 = vshrl.u32 %v572, 7
        %v574 = vsub.s32 %v571, %v573
        %v575 = vrot.slane %v568, %v574
        %v576 = vcombine.low %v564, %v565
        %v578 = vunpack.c.l.s4 1983009808
        %v579 = vunpack.c.0.s8 %v578
        %v580 = vlaneseq
        %v581 = vshrl.u32 %v580, 7
        %v582 = vsub.s32 %v579, %v581
        %v583 = vrot.slane %v576, %v582
        %v584 = vcombine.low %v556, %v563
        %v586 = vunpack.c.l.s4 1983009808
        %v587 = vunpack.c.0.s8 %v586
        %v588 = vlaneseq
        %v589 = vshrl.u32 %v588, 7
        %v590 = vsub.s32 %v587, %v589
        %v591 = vrot.slane %v584, %v590
        %v592 = vcombine.low %v566, %v567
        %v594 = vunpack.c.l.s4 1983009808
        %v595 = vunpack.c.0.s8 %v594
        %v596 = vlaneseq
        %v597 = vshrl.u32 %v596, 7
        %v598 = vsub.s32 %v595, %v597
        %v599 = vrot.slane %v592, %v598
        %v600 = vcombine.low %v575, %v583
        %v601 = vcombine.high %v575, %v583
        %v603 = vunpack.c.l.s4 1934713408
        %v604 = vunpack.c.0.s8 %v603
        %v605 = vlaneseq
        %v606 = vshrl.u32 %v605, 7
        %v607 = vsub.s32 %v604, %v606
        %v608 = vrot.slane %v600, %v607
        %v610 = vunpack.c.l.s4 1934713408
        %v611 = vunpack.c.0.s8 %v610
        %v612 = vlaneseq
        %v613 = vshrl.u32 %v612, 7
        %v614 = vsub.s32 %v611, %v613
        %v615 = vrot.slane %v601, %v614
        %v616 = vcombine.low %v591, %v599
        %v617 = vcombine.high %v591, %v599
        %v619 = vunpack.c.l.s4 1934713408
        %v620 = vunpack.c.0.s8 %v619
        %v621 = vlaneseq
        %v622 = vshrl.u32 %v621, 7
        %v623 = vsub.s32 %v620, %v622
        %v624 = vrot.slane %v616, %v623
        %v626 = vunpack.c.l.s4 1934713408
        %v627 = vunpack.c.0.s8 %v626
        %v628 = vlaneseq
        %v629 = vshrl.u32 %v628, 7
        %v630 = vsub.s32 %v627, %v629
        %v631 = vrot.slane %v617, %v630
        %v632 = vcombine.low %v608, %v624
        %v633 = vcombine.high %v608, %v624
        %v634 = vcombine.low %v615, %v631
        %v635 = vcombine.high %v615, %v631
        %637 = vrot.lane.b32.xlu0 %v480, 120
        %v638 = vpop.permute.xlu0 %637
        %639 = vrot.lane.b32.xlu0 %v480, 112
        %v640 = vpop.permute.xlu0 %639
        %641 = vrot.lane.b32.xlu0 %v480, 104
        %v642 = vpop.permute.xlu0 %641
        %643 = vrot.lane.b32.xlu0 %v480, 96
        %v644 = vpop.permute.xlu0 %643
        %645 = vrot.lane.b32.xlu0 %v638, 96
        %v646 = vpop.permute.xlu0 %645
        %647 = vrot.lane.b32.xlu0 %v640, 96
        %v648 = vpop.permute.xlu0 %647
        %649 = vrot.lane.b32.xlu0 %v642, 96
        %v650 = vpop.permute.xlu0 %649
        %v655 = vcombine.low %v644, %v648
        %v656 = vcombine.high %v644, %v648
        %v658 = vunpack.c.l.s4 1983009808
        %v659 = vunpack.c.0.s8 %v658
        %v660 = vlaneseq
        %v661 = vshrl.u32 %v660, 7
        %v662 = vsub.s32 %v659, %v661
        %v663 = vrot.slane %v655, %v662
        %v665 = vunpack.c.l.s4 1983009808
        %v666 = vunpack.c.0.s8 %v665
        %v667 = vlaneseq
        %v668 = vshrl.u32 %v667, 7
        %v669 = vsub.s32 %v666, %v668
        %v670 = vrot.slane %v656, %v669
        %v671 = vcombine.low %v646, %v650
        %v672 = vcombine.high %v646, %v650
        %v674 = vunpack.c.l.s4 1983009808
        %v675 = vunpack.c.0.s8 %v674
        %v676 = vlaneseq
        %v677 = vshrl.u32 %v676, 7
        %v678 = vsub.s32 %v675, %v677
        %v679 = vrot.slane %v671, %v678
        %v681 = vunpack.c.l.s4 1983009808
        %v682 = vunpack.c.0.s8 %v681
        %v683 = vlaneseq
        %v684 = vshrl.u32 %v683, 7
        %v685 = vsub.s32 %v682, %v684
        %v686 = vrot.slane %v672, %v685
        %v687 = vcombine.low %v663, %v679
        %v688 = vcombine.high %v663, %v679
        %v690 = vunpack.c.l.s4 1934713408
        %v691 = vunpack.c.0.s8 %v690
        %v692 = vlaneseq
        %v693 = vshrl.u32 %v692, 7
        %v694 = vsub.s32 %v691, %v693
        %v695 = vrot.slane %v687, %v694
        %v697 = vunpack.c.l.s4 1934713408
        %v698 = vunpack.c.0.s8 %v697
        %v699 = vlaneseq
        %v700 = vshrl.u32 %v699, 7
        %v701 = vsub.s32 %v698, %v700
        %v702 = vrot.slane %v688, %v701
        %v703 = vcombine.low %v670, %v686
        %v704 = vcombine.high %v670, %v686
        %v706 = vunpack.c.l.s4 1934713408
        %v707 = vunpack.c.0.s8 %v706
        %v708 = vlaneseq
        %v709 = vshrl.u32 %v708, 7
        %v710 = vsub.s32 %v707, %v709
        %v711 = vrot.slane %v703, %v710
        %v713 = vunpack.c.l.s4 1934713408
        %v714 = vunpack.c.0.s8 %v713
        %v715 = vlaneseq
        %v716 = vshrl.u32 %v715, 7
        %v717 = vsub.s32 %v714, %v716
        %v718 = vrot.slane %v704, %v717
        %v719 = vcombine.high %v695, 0.0
        %v720 = vcombine.high %v702, 0.0
        %v721 = vcombine.high %v711, 0.0
        %v722 = vcombine.high %v718, 0.0
        %v723 = vcombine.low %v695, %v702
        %v725 = vunpack.c.l.s4 1983009808
        %v726 = vunpack.c.0.s8 %v725
        %v727 = vlaneseq
        %v728 = vshrl.u32 %v727, 7
        %v729 = vsub.s32 %v726, %v728
        %v730 = vrot.slane %v723, %v729
        %v731 = vcombine.low %v719, %v720
        %v733 = vunpack.c.l.s4 1983009808
        %v734 = vunpack.c.0.s8 %v733
        %v735 = vlaneseq
        %v736 = vshrl.u32 %v735, 7
        %v737 = vsub.s32 %v734, %v736
        %v738 = vrot.slane %v731, %v737
        %v739 = vcombine.low %v711, %v718
        %v741 = vunpack.c.l.s4 1983009808
        %v742 = vunpack.c.0.s8 %v741
        %v743 = vlaneseq
        %v744 = vshrl.u32 %v743, 7
        %v745 = vsub.s32 %v742, %v744
        %v746 = vrot.slane %v739, %v745
        %v747 = vcombine.low %v721, %v722
        %v749 = vunpack.c.l.s4 1983009808
        %v750 = vunpack.c.0.s8 %v749
        %v751 = vlaneseq
        %v752 = vshrl.u32 %v751, 7
        %v753 = vsub.s32 %v750, %v752
        %v754 = vrot.slane %v747, %v753
        %v755 = vcombine.low %v730, %v738
        %v756 = vcombine.high %v730, %v738
        %v758 = vunpack.c.l.s4 1934713408
        %v759 = vunpack.c.0.s8 %v758
        %v760 = vlaneseq
        %v761 = vshrl.u32 %v760, 7
        %v762 = vsub.s32 %v759, %v761
        %v763 = vrot.slane %v755, %v762
        %v765 = vunpack.c.l.s4 1934713408
        %v766 = vunpack.c.0.s8 %v765
        %v767 = vlaneseq
        %v768 = vshrl.u32 %v767, 7
        %v769 = vsub.s32 %v766, %v768
        %v770 = vrot.slane %v756, %v769
        %v771 = vcombine.low %v746, %v754
        %v772 = vcombine.high %v746, %v754
        %v774 = vunpack.c.l.s4 1934713408
        %v775 = vunpack.c.0.s8 %v774
        %v776 = vlaneseq
        %v777 = vshrl.u32 %v776, 7
        %v778 = vsub.s32 %v775, %v777
        %v779 = vrot.slane %v771, %v778
        %v781 = vunpack.c.l.s4 1934713408
        %v782 = vunpack.c.0.s8 %v781
        %v783 = vlaneseq
        %v784 = vshrl.u32 %v783, 7
        %v785 = vsub.s32 %v782, %v784
        %v786 = vrot.slane %v772, %v785
        %v787 = vcombine.low %v763, %v779
        %v788 = vcombine.high %v763, %v779
        %v789 = vcombine.low %v770, %v786
        %v790 = vcombine.high %v770, %v786
        %792 = vrot.lane.b32.xlu0 %v489, 120
        %v793 = vpop.permute.xlu0 %792
        %794 = vrot.lane.b32.xlu0 %v489, 112
        %v795 = vpop.permute.xlu0 %794
        %796 = vrot.lane.b32.xlu0 %v489, 104
        %v797 = vpop.permute.xlu0 %796
        %798 = vrot.lane.b32.xlu0 %v489, 64
        %v799 = vpop.permute.xlu0 %798
        %800 = vrot.lane.b32.xlu0 %v793, 64
        %v801 = vpop.permute.xlu0 %800
        %802 = vrot.lane.b32.xlu0 %v795, 64
        %v803 = vpop.permute.xlu0 %802
        %804 = vrot.lane.b32.xlu0 %v797, 64
        %v805 = vpop.permute.xlu0 %804
        %v810 = vcombine.low %v799, %v803
        %v811 = vcombine.high %v799, %v803
        %v813 = vunpack.c.l.s4 1983009808
        %v814 = vunpack.c.0.s8 %v813
        %v815 = vlaneseq
        %v816 = vshrl.u32 %v815, 7
        %v817 = vsub.s32 %v814, %v816
        %v818 = vrot.slane %v810, %v817
        %v820 = vunpack.c.l.s4 1983009808
        %v821 = vunpack.c.0.s8 %v820
        %v822 = vlaneseq
        %v823 = vshrl.u32 %v822, 7
        %v824 = vsub.s32 %v821, %v823
        %v825 = vrot.slane %v811, %v824
        %v826 = vcombine.low %v801, %v805
        %v827 = vcombine.high %v801, %v805
        %v829 = vunpack.c.l.s4 1983009808
        %v830 = vunpack.c.0.s8 %v829
        %v831 = vlaneseq
        %v832 = vshrl.u32 %v831, 7
        %v833 = vsub.s32 %v830, %v832
        %v834 = vrot.slane %v826, %v833
        %v836 = vunpack.c.l.s4 1983009808
        %v837 = vunpack.c.0.s8 %v836
        %v838 = vlaneseq
        %v839 = vshrl.u32 %v838, 7
        %v840 = vsub.s32 %v837, %v839
        %v841 = vrot.slane %v827, %v840
        %v842 = vcombine.low %v818, %v834
        %v843 = vcombine.high %v818, %v834
        %v845 = vunpack.c.l.s4 1934713408
        %v846 = vunpack.c.0.s8 %v845
        %v847 = vlaneseq
        %v848 = vshrl.u32 %v847, 7
        %v849 = vsub.s32 %v846, %v848
        %v850 = vrot.slane %v842, %v849
        %v852 = vunpack.c.l.s4 1934713408
        %v853 = vunpack.c.0.s8 %v852
        %v854 = vlaneseq
        %v855 = vshrl.u32 %v854, 7
        %v856 = vsub.s32 %v853, %v855
        %v857 = vrot.slane %v843, %v856
        %v858 = vcombine.low %v825, %v841
        %v859 = vcombine.high %v825, %v841
        %v861 = vunpack.c.l.s4 1934713408
        %v862 = vunpack.c.0.s8 %v861
        %v863 = vlaneseq
        %v864 = vshrl.u32 %v863, 7
        %v865 = vsub.s32 %v862, %v864
        %v866 = vrot.slane %v858, %v865
        %v868 = vunpack.c.l.s4 1934713408
        %v869 = vunpack.c.0.s8 %v868
        %v870 = vlaneseq
        %v871 = vshrl.u32 %v870, 7
        %v872 = vsub.s32 %v869, %v871
        %v873 = vrot.slane %v859, %v872
        %v874 = vcombine.high %v850, 0.0
        %v875 = vcombine.high %v857, 0.0
        %v876 = vcombine.high %v866, 0.0
        %v877 = vcombine.high %v873, 0.0
        %v878 = vcombine.low %v850, %v857
        %v880 = vunpack.c.l.s4 1983009808
        %v881 = vunpack.c.0.s8 %v880
        %v882 = vlaneseq
        %v883 = vshrl.u32 %v882, 7
        %v884 = vsub.s32 %v881, %v883
        %v885 = vrot.slane %v878, %v884
        %v886 = vcombine.low %v874, %v875
        %v888 = vunpack.c.l.s4 1983009808
        %v889 = vunpack.c.0.s8 %v888
        %v890 = vlaneseq
        %v891 = vshrl.u32 %v890, 7
        %v892 = vsub.s32 %v889, %v891
        %v893 = vrot.slane %v886, %v892
        %v894 = vcombine.low %v866, %v873
        %v896 = vunpack.c.l.s4 1983009808
        %v897 = vunpack.c.0.s8 %v896
        %v898 = vlaneseq
        %v899 = vshrl.u32 %v898, 7
        %v900 = vsub.s32 %v897, %v899
        %v901 = vrot.slane %v894, %v900
        %v902 = vcombine.low %v876, %v877
        %v904 = vunpack.c.l.s4 1983009808
        %v905 = vunpack.c.0.s8 %v904
        %v906 = vlaneseq
        %v907 = vshrl.u32 %v906, 7
        %v908 = vsub.s32 %v905, %v907
        %v909 = vrot.slane %v902, %v908
        %v910 = vcombine.low %v885, %v893
        %v911 = vcombine.high %v885, %v893
        %v913 = vunpack.c.l.s4 1934713408
        %v914 = vunpack.c.0.s8 %v913
        %v915 = vlaneseq
        %v916 = vshrl.u32 %v915, 7
        %v917 = vsub.s32 %v914, %v916
        %v918 = vrot.slane %v910, %v917
        %v920 = vunpack.c.l.s4 1934713408
        %v921 = vunpack.c.0.s8 %v920
        %v922 = vlaneseq
        %v923 = vshrl.u32 %v922, 7
        %v924 = vsub.s32 %v921, %v923
        %v925 = vrot.slane %v911, %v924
        %v926 = vcombine.low %v901, %v909
        %v927 = vcombine.high %v901, %v909
        %v929 = vunpack.c.l.s4 1934713408
        %v930 = vunpack.c.0.s8 %v929
        %v931 = vlaneseq
        %v932 = vshrl.u32 %v931, 7
        %v933 = vsub.s32 %v930, %v932
        %v934 = vrot.slane %v926, %v933
        %v936 = vunpack.c.l.s4 1934713408
        %v937 = vunpack.c.0.s8 %v936
        %v938 = vlaneseq
        %v939 = vshrl.u32 %v938, 7
        %v940 = vsub.s32 %v937, %v939
        %v941 = vrot.slane %v927, %v940
        %v942 = vcombine.low %v918, %v934
        %v943 = vcombine.high %v918, %v934
        %v944 = vcombine.low %v925, %v941
        %v945 = vcombine.high %v925, %v941
        %v946 = vld [vmem:[%s3] sm:$0xff]
        %v947 = vld [vmem:[%s381] sm:$0x1]
        %v948 = vld [vmem:[%s385] sm:$0xff]
        %vm949 = vcmp.gt.f32.partialorder %v947, 0.5
        %v950 = vsel %vm949, -1e+30, 0.0
        %v952 = vlaneseq
        %v953 = vshrl.u32 %v952, 7
        %v954 = vsub.s32 0, %v953
        %v955 = vrot.slane %v950, %v954
        %v957 = vadd.f32 %v946, %v955
        %vm958 = vcmask 64512
        %v960 = vsel %vm958, %v632, 0
        %v963 = vsel %vm958, %v787, 0
        %965 = vmatprep.subr.mxu0 0.0
        %966 = vmatpush1.xpose.msra.mxu0 %v963
        %967 = vmatprep.subr.mxu0 0.0
        %968 = vmatpush1.xpose.msra.mxu0 0.0
        %969 = vmatprep.subr.mxu0 0.0
        %970 = vmatpush1.xpose.msra.mxu0 0.0
        %971 = vmatprep.subr.mxu0 0.0
        %972 = vmatpush1.xpose.msra.mxu0 0.0
        %973 = vmatprep.subr.mxu0 0.0
        %974 = vmatpush1.xpose.msra.mxu0 0.0
        %975 = vmatprep.subr.mxu0 0.0
        %976 = vmatpush1.xpose.msra.mxu0 0.0
        %977 = vmatprep.subr.mxu0 0.0
        %978 = vmatpush1.xpose.msra.mxu0 0.0
        %979 = vmatprep.subr.mxu0 0.0
        %980 = vmatpush1.xpose.msra.mxu0 0.0
        %981 = vmatprep.subr.mxu0 0.0
        %982 = vmatpush1.xpose.msra.mxu0 0.0
        %983 = vmatprep.subr.mxu0 0.0
        %984 = vmatpush1.xpose.msra.mxu0 0.0
        %985 = vmatprep.subr.mxu0 0.0
        %986 = vmatpush1.xpose.msra.mxu0 0.0
        %987 = vmatprep.subr.mxu0 0.0
        %988 = vmatpush1.xpose.msra.mxu0 0.0
        %989 = vmatprep.subr.mxu0 0.0
        %990 = vmatpush1.xpose.msra.mxu0 0.0
        %991 = vmatprep.subr.mxu0 0.0
        %992 = vmatpush1.xpose.msra.mxu0 0.0
        %993 = vmatprep.subr.mxu0 0.0
        %994 = vmatpush1.xpose.msra.mxu0 0.0
        %995 = vmatprep.subr.mxu0 0.0
        %996 = vmatpush1.xpose.msra.mxu0 0.0
        %997 = vmatprep.subr.mxu0 0.0
        %998 = vmatpush1.xpose.msra.mxu0 0.0
        %999 = vmatprep.subr.mxu0 0.0
        %1000 = vmatpush1.xpose.msra.mxu0 0.0
        %1001 = vmatprep.subr.mxu0 0.0
        %1002 = vmatpush1.xpose.msra.mxu0 0.0
        %1003 = vmatprep.subr.mxu0 0.0
        %1004 = vmatpush1.xpose.msra.mxu0 0.0
        %1005 = vmatprep.subr.mxu0 0.0
        %1006 = vmatpush1.xpose.msra.mxu0 0.0
        %1007 = vmatprep.subr.mxu0 0.0
        %1008 = vmatpush1.xpose.msra.mxu0 0.0
        %1009 = vmatprep.subr.mxu0 0.0
        %1010 = vmatpush1.xpose.msra.mxu0 0.0
        %1011 = vmatprep.subr.mxu0 0.0
        %1012 = vmatpush1.xpose.msra.mxu0 0.0
        %1013 = vmatprep.subr.mxu0 0.0
        %1014 = vmatpush1.xpose.msra.mxu0 0.0
        %1015 = vmatprep.subr.mxu0 0.0
        %1016 = vmatpush1.xpose.msra.mxu0 0.0
        %1017 = vmatprep.subr.mxu0 0.0
        %1018 = vmatpush1.xpose.msra.mxu0 0.0
        %1019 = vmatprep.subr.mxu0 0.0
        %1020 = vmatpush1.xpose.msra.mxu0 0.0
        %1021 = vmatprep.subr.mxu0 0.0
        %1022 = vmatpush1.xpose.msra.mxu0 0.0
        %1023 = vmatprep.subr.mxu0 0.0
        %1024 = vmatpush1.xpose.msra.mxu0 0.0
        %1025 = vmatprep.subr.mxu0 0.0
        %1026 = vmatpush1.xpose.msra.mxu0 0.0
        %1027 = vmatprep.subr.mxu0 0.0
        %1028 = vmatpush1.xpose.msra.mxu0 0.0
        %1029 = vmatprep.mubr.f32.mxu0 0.0
        %1030 = vmatmul.mubr.f32.gmra.mrb[0].mxu0 %v960
        %v1031 = vpop.f32.mrb[0].mxu0
        %v1032 = vadd.f32 %v957, %v1031
        %v1033 = vpop.f32.mrb[0].mxu0
        %1034 = vdwg.mxu0
        %v1036 = vsel %vm958, %v633, 0
        %v1039 = vsel %vm958, %v788, 0
        %1041 = vmatprep.subr.mxu0 0.0
        %1042 = vmatpush1.xpose.msra.mxu0 %v1039
        %1043 = vmatprep.subr.mxu0 0.0
        %1044 = vmatpush1.xpose.msra.mxu0 0.0
        %1045 = vmatprep.subr.mxu0 0.0
        %1046 = vmatpush1.xpose.msra.mxu0 0.0
        %1047 = vmatprep.subr.mxu0 0.0
        %1048 = vmatpush1.xpose.msra.mxu0 0.0
        %1049 = vmatprep.subr.mxu0 0.0
        %1050 = vmatpush1.xpose.msra.mxu0 0.0
        %1051 = vmatprep.subr.mxu0 0.0
        %1052 = vmatpush1.xpose.msra.mxu0 0.0
        %1053 = vmatprep.subr.mxu0 0.0
        %1054 = vmatpush1.xpose.msra.mxu0 0.0
        %1055 = vmatprep.subr.mxu0 0.0
        %1056 = vmatpush1.xpose.msra.mxu0 0.0
        %1057 = vmatprep.subr.mxu0 0.0
        %1058 = vmatpush1.xpose.msra.mxu0 0.0
        %1059 = vmatprep.subr.mxu0 0.0
        %1060 = vmatpush1.xpose.msra.mxu0 0.0
        %1061 = vmatprep.subr.mxu0 0.0
        %1062 = vmatpush1.xpose.msra.mxu0 0.0
        %1063 = vmatprep.subr.mxu0 0.0
        %1064 = vmatpush1.xpose.msra.mxu0 0.0
        %1065 = vmatprep.subr.mxu0 0.0
        %1066 = vmatpush1.xpose.msra.mxu0 0.0
        %1067 = vmatprep.subr.mxu0 0.0
        %1068 = vmatpush1.xpose.msra.mxu0 0.0
        %1069 = vmatprep.subr.mxu0 0.0
        %1070 = vmatpush1.xpose.msra.mxu0 0.0
        %1071 = vmatprep.subr.mxu0 0.0
        %1072 = vmatpush1.xpose.msra.mxu0 0.0
        %1073 = vmatprep.subr.mxu0 0.0
        %1074 = vmatpush1.xpose.msra.mxu0 0.0
        %1075 = vmatprep.subr.mxu0 0.0
        %1076 = vmatpush1.xpose.msra.mxu0 0.0
        %1077 = vmatprep.subr.mxu0 0.0
        %1078 = vmatpush1.xpose.msra.mxu0 0.0
        %1079 = vmatprep.subr.mxu0 0.0
        %1080 = vmatpush1.xpose.msra.mxu0 0.0
        %1081 = vmatprep.subr.mxu0 0.0
        %1082 = vmatpush1.xpose.msra.mxu0 0.0
        %1083 = vmatprep.subr.mxu0 0.0
        %1084 = vmatpush1.xpose.msra.mxu0 0.0
        %1085 = vmatprep.subr.mxu0 0.0
        %1086 = vmatpush1.xpose.msra.mxu0 0.0
        %1087 = vmatprep.subr.mxu0 0.0
        %1088 = vmatpush1.xpose.msra.mxu0 0.0
        %1089 = vmatprep.subr.mxu0 0.0
        %1090 = vmatpush1.xpose.msra.mxu0 0.0
        %1091 = vmatprep.subr.mxu0 0.0
        %1092 = vmatpush1.xpose.msra.mxu0 0.0
        %1093 = vmatprep.subr.mxu0 0.0
        %1094 = vmatpush1.xpose.msra.mxu0 0.0
        %1095 = vmatprep.subr.mxu0 0.0
        %1096 = vmatpush1.xpose.msra.mxu0 0.0
        %1097 = vmatprep.subr.mxu0 0.0
        %1098 = vmatpush1.xpose.msra.mxu0 0.0
        %1099 = vmatprep.subr.mxu0 0.0
        %1100 = vmatpush1.xpose.msra.mxu0 0.0
        %1101 = vmatprep.subr.mxu0 0.0
        %1102 = vmatpush1.xpose.msra.mxu0 0.0
        %1103 = vmatprep.subr.mxu0 0.0
        %1104 = vmatpush1.xpose.msra.mxu0 0.0
        %1105 = vmatprep.mubr.f32.mxu0 0.0
        %1106 = vmatmul.mubr.f32.gmra.mrb[0].mxu0 %v1036
        %v1107 = vpop.f32.mrb[0].mxu0
        %v1108 = vadd.f32 %v957, %v1107
        %v1109 = vpop.f32.mrb[0].mxu0
        %1110 = vdwg.mxu0
        %v1112 = vsel %vm958, %v634, 0
        %v1115 = vsel %vm958, %v789, 0
        %1117 = vmatprep.subr.mxu0 0.0
        %1118 = vmatpush1.xpose.msra.mxu0 %v1115
        %1119 = vmatprep.subr.mxu0 0.0
        %1120 = vmatpush1.xpose.msra.mxu0 0.0
        %1121 = vmatprep.subr.mxu0 0.0
        %1122 = vmatpush1.xpose.msra.mxu0 0.0
        %1123 = vmatprep.subr.mxu0 0.0
        %1124 = vmatpush1.xpose.msra.mxu0 0.0
        %1125 = vmatprep.subr.mxu0 0.0
        %1126 = vmatpush1.xpose.msra.mxu0 0.0
        %1127 = vmatprep.subr.mxu0 0.0
        %1128 = vmatpush1.xpose.msra.mxu0 0.0
        %1129 = vmatprep.subr.mxu0 0.0
        %1130 = vmatpush1.xpose.msra.mxu0 0.0
        %1131 = vmatprep.subr.mxu0 0.0
        %1132 = vmatpush1.xpose.msra.mxu0 0.0
        %1133 = vmatprep.subr.mxu0 0.0
        %1134 = vmatpush1.xpose.msra.mxu0 0.0
        %1135 = vmatprep.subr.mxu0 0.0
        %1136 = vmatpush1.xpose.msra.mxu0 0.0
        %1137 = vmatprep.subr.mxu0 0.0
        %1138 = vmatpush1.xpose.msra.mxu0 0.0
        %1139 = vmatprep.subr.mxu0 0.0
        %1140 = vmatpush1.xpose.msra.mxu0 0.0
        %1141 = vmatprep.subr.mxu0 0.0
        %1142 = vmatpush1.xpose.msra.mxu0 0.0
        %1143 = vmatprep.subr.mxu0 0.0
        %1144 = vmatpush1.xpose.msra.mxu0 0.0
        %1145 = vmatprep.subr.mxu0 0.0
        %1146 = vmatpush1.xpose.msra.mxu0 0.0
        %1147 = vmatprep.subr.mxu0 0.0
        %1148 = vmatpush1.xpose.msra.mxu0 0.0
        %1149 = vmatprep.subr.mxu0 0.0
        %1150 = vmatpush1.xpose.msra.mxu0 0.0
        %1151 = vmatprep.subr.mxu0 0.0
        %1152 = vmatpush1.xpose.msra.mxu0 0.0
        %1153 = vmatprep.subr.mxu0 0.0
        %1154 = vmatpush1.xpose.msra.mxu0 0.0
        %1155 = vmatprep.subr.mxu0 0.0
        %1156 = vmatpush1.xpose.msra.mxu0 0.0
        %1157 = vmatprep.subr.mxu0 0.0
        %1158 = vmatpush1.xpose.msra.mxu0 0.0
        %1159 = vmatprep.subr.mxu0 0.0
        %1160 = vmatpush1.xpose.msra.mxu0 0.0
        %1161 = vmatprep.subr.mxu0 0.0
        %1162 = vmatpush1.xpose.msra.mxu0 0.0
        %1163 = vmatprep.subr.mxu0 0.0
        %1164 = vmatpush1.xpose.msra.mxu0 0.0
        %1165 = vmatprep.subr.mxu0 0.0
        %1166 = vmatpush1.xpose.msra.mxu0 0.0
        %1167 = vmatprep.subr.mxu0 0.0
        %1168 = vmatpush1.xpose.msra.mxu0 0.0
        %1169 = vmatprep.subr.mxu0 0.0
        %1170 = vmatpush1.xpose.msra.mxu0 0.0
        %1171 = vmatprep.subr.mxu0 0.0
        %1172 = vmatpush1.xpose.msra.mxu0 0.0
        %1173 = vmatprep.subr.mxu0 0.0
        %1174 = vmatpush1.xpose.msra.mxu0 0.0
        %1175 = vmatprep.subr.mxu0 0.0
        %1176 = vmatpush1.xpose.msra.mxu0 0.0
        %1177 = vmatprep.subr.mxu0 0.0
        %1178 = vmatpush1.xpose.msra.mxu0 0.0
        %1179 = vmatprep.subr.mxu0 0.0
        %1180 = vmatpush1.xpose.msra.mxu0 0.0
        %1181 = vmatprep.mubr.f32.mxu0 0.0
        %1182 = vmatmul.mubr.f32.gmra.mrb[0].mxu0 %v1112
        %v1183 = vpop.f32.mrb[0].mxu0
        %v1184 = vadd.f32 %v957, %v1183
        %v1185 = vpop.f32.mrb[0].mxu0
        %1186 = vdwg.mxu0
        %v1188 = vsel %vm958, %v635, 0
        %v1191 = vsel %vm958, %v790, 0
        %1193 = vmatprep.subr.mxu0 0.0
        %1194 = vmatpush1.xpose.msra.mxu0 %v1191
        %1195 = vmatprep.subr.mxu0 0.0
        %1196 = vmatpush1.xpose.msra.mxu0 0.0
        %1197 = vmatprep.subr.mxu0 0.0
        %1198 = vmatpush1.xpose.msra.mxu0 0.0
        %1199 = vmatprep.subr.mxu0 0.0
        %1200 = vmatpush1.xpose.msra.mxu0 0.0
        %1201 = vmatprep.subr.mxu0 0.0
        %1202 = vmatpush1.xpose.msra.mxu0 0.0
        %1203 = vmatprep.subr.mxu0 0.0
        %1204 = vmatpush1.xpose.msra.mxu0 0.0
        %1205 = vmatprep.subr.mxu0 0.0
        %1206 = vmatpush1.xpose.msra.mxu0 0.0
        %1207 = vmatprep.subr.mxu0 0.0
        %1208 = vmatpush1.xpose.msra.mxu0 0.0
        %1209 = vmatprep.subr.mxu0 0.0
        %1210 = vmatpush1.xpose.msra.mxu0 0.0
        %1211 = vmatprep.subr.mxu0 0.0
        %1212 = vmatpush1.xpose.msra.mxu0 0.0
        %1213 = vmatprep.subr.mxu0 0.0
        %1214 = vmatpush1.xpose.msra.mxu0 0.0
        %1215 = vmatprep.subr.mxu0 0.0
        %1216 = vmatpush1.xpose.msra.mxu0 0.0
        %1217 = vmatprep.subr.mxu0 0.0
        %1218 = vmatpush1.xpose.msra.mxu0 0.0
        %1219 = vmatprep.subr.mxu0 0.0
        %1220 = vmatpush1.xpose.msra.mxu0 0.0
        %1221 = vmatprep.subr.mxu0 0.0
        %1222 = vmatpush1.xpose.msra.mxu0 0.0
        %1223 = vmatprep.subr.mxu0 0.0
        %1224 = vmatpush1.xpose.msra.mxu0 0.0
        %1225 = vmatprep.subr.mxu0 0.0
        %1226 = vmatpush1.xpose.msra.mxu0 0.0
        %1227 = vmatprep.subr.mxu0 0.0
        %1228 = vmatpush1.xpose.msra.mxu0 0.0
        %1229 = vmatprep.subr.mxu0 0.0
        %1230 = vmatpush1.xpose.msra.mxu0 0.0
        %1231 = vmatprep.subr.mxu0 0.0
        %1232 = vmatpush1.xpose.msra.mxu0 0.0
        %1233 = vmatprep.subr.mxu0 0.0
        %1234 = vmatpush1.xpose.msra.mxu0 0.0
        %1235 = vmatprep.subr.mxu0 0.0
        %1236 = vmatpush1.xpose.msra.mxu0 0.0
        %1237 = vmatprep.subr.mxu0 0.0
        %1238 = vmatpush1.xpose.msra.mxu0 0.0
        %1239 = vmatprep.subr.mxu0 0.0
        %1240 = vmatpush1.xpose.msra.mxu0 0.0
        %1241 = vmatprep.subr.mxu0 0.0
        %1242 = vmatpush1.xpose.msra.mxu0 0.0
        %1243 = vmatprep.subr.mxu0 0.0
        %1244 = vmatpush1.xpose.msra.mxu0 0.0
        %1245 = vmatprep.subr.mxu0 0.0
        %1246 = vmatpush1.xpose.msra.mxu0 0.0
        %1247 = vmatprep.subr.mxu0 0.0
        %1248 = vmatpush1.xpose.msra.mxu0 0.0
        %1249 = vmatprep.subr.mxu0 0.0
        %1250 = vmatpush1.xpose.msra.mxu0 0.0
        %1251 = vmatprep.subr.mxu0 0.0
        %1252 = vmatpush1.xpose.msra.mxu0 0.0
        %1253 = vmatprep.subr.mxu0 0.0
        %1254 = vmatpush1.xpose.msra.mxu0 0.0
        %1255 = vmatprep.subr.mxu0 0.0
        %1256 = vmatpush1.xpose.msra.mxu0 0.0
        %1257 = vmatprep.mubr.f32.mxu0 0.0
        %1258 = vmatmul.mubr.f32.gmra.mrb[0].mxu0 %v1188
        %v1259 = vpop.f32.mrb[0].mxu0
        %v1260 = vadd.f32 %v957, %v1259
        %v1261 = vpop.f32.mrb[0].mxu0
        %1262 = vdwg.mxu0
        %v1263 = vsel %vm958, %v1032, -inf
        %1264 = vmax.xlane.f32.xlu0 %v1263
        %v1265 = vpop.xlane.xlu0 %1264
        %v1266 = vsel %vm958, %v1108, -inf
        %1267 = vmax.xlane.f32.xlu0 %v1266
        %v1268 = vpop.xlane.xlu0 %1267
        %v1269 = vsel %vm958, %v1184, -inf
        %1270 = vmax.xlane.f32.xlu0 %v1269
        %v1271 = vpop.xlane.xlu0 %1270
        %v1272 = vsel %vm958, %v1260, -inf
        %1273 = vmax.xlane.f32.xlu0 %v1272
        %v1274 = vpop.xlane.xlu0 %1273
        %v1275 = vsub.f32 %v1032, %v1265
        %v1276 = vsub.f32 %v1108, %v1268
        %v1277 = vsub.f32 %v1184, %v1271
        %v1278 = vsub.f32 %v1260, %v1274
        %v1279 = vmul.f32 %v1275, 1.442695
        %v1280 = vpow.pop %v1279
        %v1281 = vmul.f32 %v1276, 1.442695
        %v1282 = vpow.pop %v1281
        %v1283 = vmul.f32 %v1277, 1.442695
        %v1284 = vpow.pop %v1283
        %v1285 = vmul.f32 %v1278, 1.442695
        %v1286 = vpow.pop %v1285
        %v1287 = vsel %vm958, %v1280, 0.0
        %1288 = vadd.xlane.f32.xlu0 %v1287
        %v1289 = vpop.xlane.xlu0 %1288
        %v1290 = vsel %vm958, %v1282, 0.0
        %1291 = vadd.xlane.f32.xlu0 %v1290
        %v1292 = vpop.xlane.xlu0 %1291
        %v1293 = vsel %vm958, %v1284, 0.0
        %1294 = vadd.xlane.f32.xlu0 %v1293
        %v1295 = vpop.xlane.xlu0 %1294
        %v1296 = vsel %vm958, %v1286, 0.0
        %1297 = vadd.xlane.f32.xlu0 %v1296
        %v1298 = vpop.xlane.xlu0 %1297
        %v1299 = vrcp.pop %v1289
        %v1300 = vrcp.pop %v1292
        %v1301 = vrcp.pop %v1295
        %v1302 = vrcp.pop %v1298
        %v1303 = vmul.f32 %v1280, %v1299
        %v1304 = vmul.f32 %v1282, %v1300
        %v1305 = vmul.f32 %v1284, %v1301
        %v1306 = vmul.f32 %v1286, %v1302
        %v1308 = vsel %vm958, %v1303, 0
        %1310 = vmatprep.subr.mxu0 0.0
        %1311 = vmatpush1.msra.mxu0 %v942
        %1312 = vmatprep.subr.mxu0 0.0
        %1313 = vmatpush1.msra.mxu0 0.0
        %1314 = vmatprep.subr.mxu0 0.0
        %1315 = vmatpush1.msra.mxu0 0.0
        %1316 = vmatprep.subr.mxu0 0.0
        %1317 = vmatpush1.msra.mxu0 0.0
        %1318 = vmatprep.subr.mxu0 0.0
        %1319 = vmatpush1.msra.mxu0 0.0
        %1320 = vmatprep.subr.mxu0 0.0
        %1321 = vmatpush1.msra.mxu0 0.0
        %1322 = vmatprep.subr.mxu0 0.0
        %1323 = vmatpush1.msra.mxu0 0.0
        %1324 = vmatprep.subr.mxu0 0.0
        %1325 = vmatpush1.msra.mxu0 0.0
        %1326 = vmatprep.subr.mxu0 0.0
        %1327 = vmatpush1.msra.mxu0 0.0
        %1328 = vmatprep.subr.mxu0 0.0
        %1329 = vmatpush1.msra.mxu0 0.0
        %1330 = vmatprep.subr.mxu0 0.0
        %1331 = vmatpush1.msra.mxu0 0.0
        %1332 = vmatprep.subr.mxu0 0.0
        %1333 = vmatpush1.msra.mxu0 0.0
        %1334 = vmatprep.subr.mxu0 0.0
        %1335 = vmatpush1.msra.mxu0 0.0
        %1336 = vmatprep.subr.mxu0 0.0
        %1337 = vmatpush1.msra.mxu0 0.0
        %1338 = vmatprep.subr.mxu0 0.0
        %1339 = vmatpush1.msra.mxu0 0.0
        %1340 = vmatprep.subr.mxu0 0.0
        %1341 = vmatpush1.msra.mxu0 0.0
        %1342 = vmatprep.subr.mxu0 0.0
        %1343 = vmatpush1.msra.mxu0 0.0
        %1344 = vmatprep.subr.mxu0 0.0
        %1345 = vmatpush1.msra.mxu0 0.0
        %1346 = vmatprep.subr.mxu0 0.0
        %1347 = vmatpush1.msra.mxu0 0.0
        %1348 = vmatprep.subr.mxu0 0.0
        %1349 = vmatpush1.msra.mxu0 0.0
        %1350 = vmatprep.subr.mxu0 0.0
        %1351 = vmatpush1.msra.mxu0 0.0
        %1352 = vmatprep.subr.mxu0 0.0
        %1353 = vmatpush1.msra.mxu0 0.0
        %1354 = vmatprep.subr.mxu0 0.0
        %1355 = vmatpush1.msra.mxu0 0.0
        %1356 = vmatprep.subr.mxu0 0.0
        %1357 = vmatpush1.msra.mxu0 0.0
        %1358 = vmatprep.subr.mxu0 0.0
        %1359 = vmatpush1.msra.mxu0 0.0
        %1360 = vmatprep.subr.mxu0 0.0
        %1361 = vmatpush1.msra.mxu0 0.0
        %1362 = vmatprep.subr.mxu0 0.0
        %1363 = vmatpush1.msra.mxu0 0.0
        %1364 = vmatprep.subr.mxu0 0.0
        %1365 = vmatpush1.msra.mxu0 0.0
        %1366 = vmatprep.subr.mxu0 0.0
        %1367 = vmatpush1.msra.mxu0 0.0
        %1368 = vmatprep.subr.mxu0 0.0
        %1369 = vmatpush1.msra.mxu0 0.0
        %1370 = vmatprep.subr.mxu0 0.0
        %1371 = vmatpush1.msra.mxu0 0.0
        %1372 = vmatprep.subr.mxu0 0.0
        %1373 = vmatpush1.msra.mxu0 0.0
        %1374 = vmatprep.mubr.f32.mxu0 0.0
        %1375 = vmatmul.mubr.f32.gmra.mrb[0].mxu0 %v1308
        %v1376 = vpop.f32.mrb[0].mxu0
        %v1377 = vadd.f32 0.0, %v1376
        %v1378 = vpop.f32.mrb[0].mxu0
        %1379 = vdwg.mxu0
        %v1381 = vsel %vm958, %v1304, 0
        %1383 = vmatprep.subr.mxu0 0.0
        %1384 = vmatpush1.msra.mxu0 %v943
        %1385 = vmatprep.subr.mxu0 0.0
        %1386 = vmatpush1.msra.mxu0 0.0
        %1387 = vmatprep.subr.mxu0 0.0
        %1388 = vmatpush1.msra.mxu0 0.0
        %1389 = vmatprep.subr.mxu0 0.0
        %1390 = vmatpush1.msra.mxu0 0.0
        %1391 = vmatprep.subr.mxu0 0.0
        %1392 = vmatpush1.msra.mxu0 0.0
        %1393 = vmatprep.subr.mxu0 0.0
        %1394 = vmatpush1.msra.mxu0 0.0
        %1395 = vmatprep.subr.mxu0 0.0
        %1396 = vmatpush1.msra.mxu0 0.0
        %1397 = vmatprep.subr.mxu0 0.0
        %1398 = vmatpush1.msra.mxu0 0.0
        %1399 = vmatprep.subr.mxu0 0.0
        %1400 = vmatpush1.msra.mxu0 0.0
        %1401 = vmatprep.subr.mxu0 0.0
        %1402 = vmatpush1.msra.mxu0 0.0
        %1403 = vmatprep.subr.mxu0 0.0
        %1404 = vmatpush1.msra.mxu0 0.0
        %1405 = vmatprep.subr.mxu0 0.0
        %1406 = vmatpush1.msra.mxu0 0.0
        %1407 = vmatprep.subr.mxu0 0.0
        %1408 = vmatpush1.msra.mxu0 0.0
        %1409 = vmatprep.subr.mxu0 0.0
        %1410 = vmatpush1.msra.mxu0 0.0
        %1411 = vmatprep.subr.mxu0 0.0
        %1412 = vmatpush1.msra.mxu0 0.0
        %1413 = vmatprep.subr.mxu0 0.0
        %1414 = vmatpush1.msra.mxu0 0.0
        %1415 = vmatprep.subr.mxu0 0.0
        %1416 = vmatpush1.msra.mxu0 0.0
        %1417 = vmatprep.subr.mxu0 0.0
        %1418 = vmatpush1.msra.mxu0 0.0
        %1419 = vmatprep.subr.mxu0 0.0
        %1420 = vmatpush1.msra.mxu0 0.0
        %1421 = vmatprep.subr.mxu0 0.0
        %1422 = vmatpush1.msra.mxu0 0.0
        %1423 = vmatprep.subr.mxu0 0.0
        %1424 = vmatpush1.msra.mxu0 0.0
        %1425 = vmatprep.subr.mxu0 0.0
        %1426 = vmatpush1.msra.mxu0 0.0
        %1427 = vmatprep.subr.mxu0 0.0
        %1428 = vmatpush1.msra.mxu0 0.0
        %1429 = vmatprep.subr.mxu0 0.0
        %1430 = vmatpush1.msra.mxu0 0.0
        %1431 = vmatprep.subr.mxu0 0.0
        %1432 = vmatpush1.msra.mxu0 0.0
        %1433 = vmatprep.subr.mxu0 0.0
        %1434 = vmatpush1.msra.mxu0 0.0
        %1435 = vmatprep.subr.mxu0 0.0
        %1436 = vmatpush1.msra.mxu0 0.0
        %1437 = vmatprep.subr.mxu0 0.0
        %1438 = vmatpush1.msra.mxu0 0.0
        %1439 = vmatprep.subr.mxu0 0.0
        %1440 = vmatpush1.msra.mxu0 0.0
        %1441 = vmatprep.subr.mxu0 0.0
        %1442 = vmatpush1.msra.mxu0 0.0
        %1443 = vmatprep.subr.mxu0 0.0
        %1444 = vmatpush1.msra.mxu0 0.0
        %1445 = vmatprep.subr.mxu0 0.0
        %1446 = vmatpush1.msra.mxu0 0.0
        %1447 = vmatprep.mubr.f32.mxu0 0.0
        %1448 = vmatmul.mubr.f32.gmra.mrb[0].mxu0 %v1381
        %v1449 = vpop.f32.mrb[0].mxu0
        %v1450 = vadd.f32 0.0, %v1449
        %v1451 = vpop.f32.mrb[0].mxu0
        %1452 = vdwg.mxu0
        %v1454 = vsel %vm958, %v1305, 0
        %1456 = vmatprep.subr.mxu0 0.0
        %1457 = vmatpush1.msra.mxu0 %v944
        %1458 = vmatprep.subr.mxu0 0.0
        %1459 = vmatpush1.msra.mxu0 0.0
        %1460 = vmatprep.subr.mxu0 0.0
        %1461 = vmatpush1.msra.mxu0 0.0
        %1462 = vmatprep.subr.mxu0 0.0
        %1463 = vmatpush1.msra.mxu0 0.0
        %1464 = vmatprep.subr.mxu0 0.0
        %1465 = vmatpush1.msra.mxu0 0.0
        %1466 = vmatprep.subr.mxu0 0.0
        %1467 = vmatpush1.msra.mxu0 0.0
        %1468 = vmatprep.subr.mxu0 0.0
        %1469 = vmatpush1.msra.mxu0 0.0
        %1470 = vmatprep.subr.mxu0 0.0
        %1471 = vmatpush1.msra.mxu0 0.0
        %1472 = vmatprep.subr.mxu0 0.0
        %1473 = vmatpush1.msra.mxu0 0.0
        %1474 = vmatprep.subr.mxu0 0.0
        %1475 = vmatpush1.msra.mxu0 0.0
        %1476 = vmatprep.subr.mxu0 0.0
        %1477 = vmatpush1.msra.mxu0 0.0
        %1478 = vmatprep.subr.mxu0 0.0
        %1479 = vmatpush1.msra.mxu0 0.0
        %1480 = vmatprep.subr.mxu0 0.0
        %1481 = vmatpush1.msra.mxu0 0.0
        %1482 = vmatprep.subr.mxu0 0.0
        %1483 = vmatpush1.msra.mxu0 0.0
        %1484 = vmatprep.subr.mxu0 0.0
        %1485 = vmatpush1.msra.mxu0 0.0
        %1486 = vmatprep.subr.mxu0 0.0
        %1487 = vmatpush1.msra.mxu0 0.0
        %1488 = vmatprep.subr.mxu0 0.0
        %1489 = vmatpush1.msra.mxu0 0.0
        %1490 = vmatprep.subr.mxu0 0.0
        %1491 = vmatpush1.msra.mxu0 0.0
        %1492 = vmatprep.subr.mxu0 0.0
        %1493 = vmatpush1.msra.mxu0 0.0
        %1494 = vmatprep.subr.mxu0 0.0
        %1495 = vmatpush1.msra.mxu0 0.0
        %1496 = vmatprep.subr.mxu0 0.0
        %1497 = vmatpush1.msra.mxu0 0.0
        %1498 = vmatprep.subr.mxu0 0.0
        %1499 = vmatpush1.msra.mxu0 0.0
        %1500 = vmatprep.subr.mxu0 0.0
        %1501 = vmatpush1.msra.mxu0 0.0
        %1502 = vmatprep.subr.mxu0 0.0
        %1503 = vmatpush1.msra.mxu0 0.0
        %1504 = vmatprep.subr.mxu0 0.0
        %1505 = vmatpush1.msra.mxu0 0.0
        %1506 = vmatprep.subr.mxu0 0.0
        %1507 = vmatpush1.msra.mxu0 0.0
        %1508 = vmatprep.subr.mxu0 0.0
        %1509 = vmatpush1.msra.mxu0 0.0
        %1510 = vmatprep.subr.mxu0 0.0
        %1511 = vmatpush1.msra.mxu0 0.0
        %1512 = vmatprep.subr.mxu0 0.0
        %1513 = vmatpush1.msra.mxu0 0.0
        %1514 = vmatprep.subr.mxu0 0.0
        %1515 = vmatpush1.msra.mxu0 0.0
        %1516 = vmatprep.subr.mxu0 0.0
        %1517 = vmatpush1.msra.mxu0 0.0
        %1518 = vmatprep.subr.mxu0 0.0
        %1519 = vmatpush1.msra.mxu0 0.0
        %1520 = vmatprep.mubr.f32.mxu0 0.0
        %1521 = vmatmul.mubr.f32.gmra.mrb[0].mxu0 %v1454
        %v1522 = vpop.f32.mrb[0].mxu0
        %v1523 = vadd.f32 0.0, %v1522
        %v1524 = vpop.f32.mrb[0].mxu0
        %1525 = vdwg.mxu0
        %v1527 = vsel %vm958, %v1306, 0
        %1529 = vmatprep.subr.mxu0 0.0
        %1530 = vmatpush1.msra.mxu0 %v945
        %1531 = vmatprep.subr.mxu0 0.0
        %1532 = vmatpush1.msra.mxu0 0.0
        %1533 = vmatprep.subr.mxu0 0.0
        %1534 = vmatpush1.msra.mxu0 0.0
        %1535 = vmatprep.subr.mxu0 0.0
        %1536 = vmatpush1.msra.mxu0 0.0
        %1537 = vmatprep.subr.mxu0 0.0
        %1538 = vmatpush1.msra.mxu0 0.0
        %1539 = vmatprep.subr.mxu0 0.0
        %1540 = vmatpush1.msra.mxu0 0.0
        %1541 = vmatprep.subr.mxu0 0.0
        %1542 = vmatpush1.msra.mxu0 0.0
        %1543 = vmatprep.subr.mxu0 0.0
        %1544 = vmatpush1.msra.mxu0 0.0
        %1545 = vmatprep.subr.mxu0 0.0
        %1546 = vmatpush1.msra.mxu0 0.0
        %1547 = vmatprep.subr.mxu0 0.0
        %1548 = vmatpush1.msra.mxu0 0.0
        %1549 = vmatprep.subr.mxu0 0.0
        %1550 = vmatpush1.msra.mxu0 0.0
        %1551 = vmatprep.subr.mxu0 0.0
        %1552 = vmatpush1.msra.mxu0 0.0
        %1553 = vmatprep.subr.mxu0 0.0
        %1554 = vmatpush1.msra.mxu0 0.0
        %1555 = vmatprep.subr.mxu0 0.0
        %1556 = vmatpush1.msra.mxu0 0.0
        %1557 = vmatprep.subr.mxu0 0.0
        %1558 = vmatpush1.msra.mxu0 0.0
        %1559 = vmatprep.subr.mxu0 0.0
        %1560 = vmatpush1.msra.mxu0 0.0
        %1561 = vmatprep.subr.mxu0 0.0
        %1562 = vmatpush1.msra.mxu0 0.0
        %1563 = vmatprep.subr.mxu0 0.0
        %1564 = vmatpush1.msra.mxu0 0.0
        %1565 = vmatprep.subr.mxu0 0.0
        %1566 = vmatpush1.msra.mxu0 0.0
        %1567 = vmatprep.subr.mxu0 0.0
        %1568 = vmatpush1.msra.mxu0 0.0
        %1569 = vmatprep.subr.mxu0 0.0
        %1570 = vmatpush1.msra.mxu0 0.0
        %1571 = vmatprep.subr.mxu0 0.0
        %1572 = vmatpush1.msra.mxu0 0.0
        %1573 = vmatprep.subr.mxu0 0.0
        %1574 = vmatpush1.msra.mxu0 0.0
        %1575 = vmatprep.subr.mxu0 0.0
        %1576 = vmatpush1.msra.mxu0 0.0
        %1577 = vmatprep.subr.mxu0 0.0
        %1578 = vmatpush1.msra.mxu0 0.0
        %1579 = vmatprep.subr.mxu0 0.0
        %1580 = vmatpush1.msra.mxu0 0.0
        %1581 = vmatprep.subr.mxu0 0.0
        %1582 = vmatpush1.msra.mxu0 0.0
        %1583 = vmatprep.subr.mxu0 0.0
        %1584 = vmatpush1.msra.mxu0 0.0
        %1585 = vmatprep.subr.mxu0 0.0
        %1586 = vmatpush1.msra.mxu0 0.0
        %1587 = vmatprep.subr.mxu0 0.0
        %1588 = vmatpush1.msra.mxu0 0.0
        %1589 = vmatprep.subr.mxu0 0.0
        %1590 = vmatpush1.msra.mxu0 0.0
        %1591 = vmatprep.subr.mxu0 0.0
        %1592 = vmatpush1.msra.mxu0 0.0
        %1593 = vmatprep.mubr.f32.mxu0 0.0
        %1594 = vmatmul.mubr.f32.gmra.mrb[0].mxu0 %v1527
        %v1595 = vpop.f32.mrb[0].mxu0
        %v1596 = vadd.f32 0.0, %v1595
        %v1597 = vpop.f32.mrb[0].mxu0
        %1598 = vdwg.mxu0
        %v1599 = vld [vmem:[%s5] sm:$0xff]
        %s1600 = scalar_lea.vmem %s5, 8
        %v1601 = vld [vmem:[%s1600] sm:$0xff]
        %v1603 = vsel %vm958, %v1450, 0
        %1605 = vmatprep.subr.mxu0 0.0
        %1606 = vmatpush1.msra.mxu0 %v1601
        %1607 = vmatprep.subr.mxu0 0.0
        %1608 = vmatpush1.msra.mxu0 0.0
        %1609 = vmatprep.subr.mxu0 0.0
        %1610 = vmatpush1.msra.mxu0 0.0
        %1611 = vmatprep.subr.mxu0 0.0
        %1612 = vmatpush1.msra.mxu0 0.0
        %1613 = vmatprep.subr.mxu0 0.0
        %1614 = vmatpush1.msra.mxu0 0.0
        %1615 = vmatprep.subr.mxu0 0.0
        %1616 = vmatpush1.msra.mxu0 0.0
        %1617 = vmatprep.subr.mxu0 0.0
        %1618 = vmatpush1.msra.mxu0 0.0
        %1619 = vmatprep.subr.mxu0 0.0
        %1620 = vmatpush1.msra.mxu0 0.0
        %1621 = vmatprep.subr.mxu0 0.0
        %1622 = vmatpush1.msra.mxu0 0.0
        %1623 = vmatprep.subr.mxu0 0.0
        %1624 = vmatpush1.msra.mxu0 0.0
        %1625 = vmatprep.subr.mxu0 0.0
        %1626 = vmatpush1.msra.mxu0 0.0
        %1627 = vmatprep.subr.mxu0 0.0
        %1628 = vmatpush1.msra.mxu0 0.0
        %1629 = vmatprep.subr.mxu0 0.0
        %1630 = vmatpush1.msra.mxu0 0.0
        %1631 = vmatprep.subr.mxu0 0.0
        %1632 = vmatpush1.msra.mxu0 0.0
        %1633 = vmatprep.subr.mxu0 0.0
        %1634 = vmatpush1.msra.mxu0 0.0
        %1635 = vmatprep.subr.mxu0 0.0
        %1636 = vmatpush1.msra.mxu0 0.0
        %1637 = vmatprep.subr.mxu0 0.0
        %1638 = vmatpush1.msra.mxu0 0.0
        %1639 = vmatprep.subr.mxu0 0.0
        %1640 = vmatpush1.msra.mxu0 0.0
        %1641 = vmatprep.subr.mxu0 0.0
        %1642 = vmatpush1.msra.mxu0 0.0
        %1643 = vmatprep.subr.mxu0 0.0
        %1644 = vmatpush1.msra.mxu0 0.0
        %1645 = vmatprep.subr.mxu0 0.0
        %1646 = vmatpush1.msra.mxu0 0.0
        %1647 = vmatprep.subr.mxu0 0.0
        %1648 = vmatpush1.msra.mxu0 0.0
        %1649 = vmatprep.subr.mxu0 0.0
        %1650 = vmatpush1.msra.mxu0 0.0
        %1651 = vmatprep.subr.mxu0 0.0
        %1652 = vmatpush1.msra.mxu0 0.0
        %1653 = vmatprep.subr.mxu0 0.0
        %1654 = vmatpush1.msra.mxu0 0.0
        %1655 = vmatprep.subr.mxu0 0.0
        %1656 = vmatpush1.msra.mxu0 0.0
        %1657 = vmatprep.subr.mxu0 0.0
        %1658 = vmatpush1.msra.mxu0 0.0
        %1659 = vmatprep.subr.mxu0 0.0
        %1660 = vmatpush1.msra.mxu0 0.0
        %1661 = vmatprep.subr.mxu0 0.0
        %1662 = vmatpush1.msra.mxu0 0.0
        %1663 = vmatprep.subr.mxu0 0.0
        %1664 = vmatpush1.msra.mxu0 0.0
        %1665 = vmatprep.subr.mxu0 0.0
        %1666 = vmatpush1.msra.mxu0 0.0
        %1667 = vmatprep.subr.mxu0 0.0
        %1668 = vmatpush1.msra.mxu0 0.0
        %1669 = vmatprep.mubr.f32.mxu0 0.0
        %1670 = vmatmul.mubr.f32.gmra.mrb[0].mxu0 %v1603
        %v1671 = vpop.f32.mrb[0].mxu0
        %v1672 = vadd.f32 0.0, %v1671
        %v1673 = vpop.f32.mrb[0].mxu0
        %1674 = vdwg.mxu0
        %v1676 = vsel %vm958, %v1377, 0
        %1678 = vmatprep.subr.mxu0 0.0
        %1679 = vmatpush1.msra.mxu0 %v1599
        %1680 = vmatprep.subr.mxu0 0.0
        %1681 = vmatpush1.msra.mxu0 0.0
        %1682 = vmatprep.subr.mxu0 0.0
        %1683 = vmatpush1.msra.mxu0 0.0
        %1684 = vmatprep.subr.mxu0 0.0
        %1685 = vmatpush1.msra.mxu0 0.0
        %1686 = vmatprep.subr.mxu0 0.0
        %1687 = vmatpush1.msra.mxu0 0.0
        %1688 = vmatprep.subr.mxu0 0.0
        %1689 = vmatpush1.msra.mxu0 0.0
        %1690 = vmatprep.subr.mxu0 0.0
        %1691 = vmatpush1.msra.mxu0 0.0
        %1692 = vmatprep.subr.mxu0 0.0
        %1693 = vmatpush1.msra.mxu0 0.0
        %1694 = vmatprep.subr.mxu0 0.0
        %1695 = vmatpush1.msra.mxu0 0.0
        %1696 = vmatprep.subr.mxu0 0.0
        %1697 = vmatpush1.msra.mxu0 0.0
        %1698 = vmatprep.subr.mxu0 0.0
        %1699 = vmatpush1.msra.mxu0 0.0
        %1700 = vmatprep.subr.mxu0 0.0
        %1701 = vmatpush1.msra.mxu0 0.0
        %1702 = vmatprep.subr.mxu0 0.0
        %1703 = vmatpush1.msra.mxu0 0.0
        %1704 = vmatprep.subr.mxu0 0.0
        %1705 = vmatpush1.msra.mxu0 0.0
        %1706 = vmatprep.subr.mxu0 0.0
        %1707 = vmatpush1.msra.mxu0 0.0
        %1708 = vmatprep.subr.mxu0 0.0
        %1709 = vmatpush1.msra.mxu0 0.0
        %1710 = vmatprep.subr.mxu0 0.0
        %1711 = vmatpush1.msra.mxu0 0.0
        %1712 = vmatprep.subr.mxu0 0.0
        %1713 = vmatpush1.msra.mxu0 0.0
        %1714 = vmatprep.subr.mxu0 0.0
        %1715 = vmatpush1.msra.mxu0 0.0
        %1716 = vmatprep.subr.mxu0 0.0
        %1717 = vmatpush1.msra.mxu0 0.0
        %1718 = vmatprep.subr.mxu0 0.0
        %1719 = vmatpush1.msra.mxu0 0.0
        %1720 = vmatprep.subr.mxu0 0.0
        %1721 = vmatpush1.msra.mxu0 0.0
        %1722 = vmatprep.subr.mxu0 0.0
        %1723 = vmatpush1.msra.mxu0 0.0
        %1724 = vmatprep.subr.mxu0 0.0
        %1725 = vmatpush1.msra.mxu0 0.0
        %1726 = vmatprep.subr.mxu0 0.0
        %1727 = vmatpush1.msra.mxu0 0.0
        %1728 = vmatprep.subr.mxu0 0.0
        %1729 = vmatpush1.msra.mxu0 0.0
        %1730 = vmatprep.subr.mxu0 0.0
        %1731 = vmatpush1.msra.mxu0 0.0
        %1732 = vmatprep.subr.mxu0 0.0
        %1733 = vmatpush1.msra.mxu0 0.0
        %1734 = vmatprep.subr.mxu0 0.0
        %1735 = vmatpush1.msra.mxu0 0.0
        %1736 = vmatprep.subr.mxu0 0.0
        %1737 = vmatpush1.msra.mxu0 0.0
        %1738 = vmatprep.subr.mxu0 0.0
        %1739 = vmatpush1.msra.mxu0 0.0
        %1740 = vmatprep.subr.mxu0 0.0
        %1741 = vmatpush1.msra.mxu0 0.0
        %1742 = vmatprep.mubr.f32.mxu0 0.0
        %1743 = vmatmul.mubr.f32.gmra.mrb[0].mxu0 %v1676
        %v1744 = vpop.f32.mrb[0].mxu0
        %v1745 = vadd.f32 %v1672, %v1744
        %v1746 = vpop.f32.mrb[0].mxu0
        %1747 = vdwg.mxu0
        %s1748 = scalar_lea.vmem %s5, 16
        %v1749 = vld [vmem:[%s1748] sm:$0xff]
        %v1751 = vsel %vm958, %v1523, 0
        %1753 = vmatprep.subr.mxu0 0.0
        %1754 = vmatpush1.msra.mxu0 %v1749
        %1755 = vmatprep.subr.mxu0 0.0
        %1756 = vmatpush1.msra.mxu0 0.0
        %1757 = vmatprep.subr.mxu0 0.0
        %1758 = vmatpush1.msra.mxu0 0.0
        %1759 = vmatprep.subr.mxu0 0.0
        %1760 = vmatpush1.msra.mxu0 0.0
        %1761 = vmatprep.subr.mxu0 0.0
        %1762 = vmatpush1.msra.mxu0 0.0
        %1763 = vmatprep.subr.mxu0 0.0
        %1764 = vmatpush1.msra.mxu0 0.0
        %1765 = vmatprep.subr.mxu0 0.0
        %1766 = vmatpush1.msra.mxu0 0.0
        %1767 = vmatprep.subr.mxu0 0.0
        %1768 = vmatpush1.msra.mxu0 0.0
        %1769 = vmatprep.subr.mxu0 0.0
        %1770 = vmatpush1.msra.mxu0 0.0
        %1771 = vmatprep.subr.mxu0 0.0
        %1772 = vmatpush1.msra.mxu0 0.0
        %1773 = vmatprep.subr.mxu0 0.0
        %1774 = vmatpush1.msra.mxu0 0.0
        %1775 = vmatprep.subr.mxu0 0.0
        %1776 = vmatpush1.msra.mxu0 0.0
        %1777 = vmatprep.subr.mxu0 0.0
        %1778 = vmatpush1.msra.mxu0 0.0
        %1779 = vmatprep.subr.mxu0 0.0
        %1780 = vmatpush1.msra.mxu0 0.0
        %1781 = vmatprep.subr.mxu0 0.0
        %1782 = vmatpush1.msra.mxu0 0.0
        %1783 = vmatprep.subr.mxu0 0.0
        %1784 = vmatpush1.msra.mxu0 0.0
        %1785 = vmatprep.subr.mxu0 0.0
        %1786 = vmatpush1.msra.mxu0 0.0
        %1787 = vmatprep.subr.mxu0 0.0
        %1788 = vmatpush1.msra.mxu0 0.0
        %1789 = vmatprep.subr.mxu0 0.0
        %1790 = vmatpush1.msra.mxu0 0.0
        %1791 = vmatprep.subr.mxu0 0.0
        %1792 = vmatpush1.msra.mxu0 0.0
        %1793 = vmatprep.subr.mxu0 0.0
        %1794 = vmatpush1.msra.mxu0 0.0
        %1795 = vmatprep.subr.mxu0 0.0
        %1796 = vmatpush1.msra.mxu0 0.0
        %1797 = vmatprep.subr.mxu0 0.0
        %1798 = vmatpush1.msra.mxu0 0.0
        %1799 = vmatprep.subr.mxu0 0.0
        %1800 = vmatpush1.msra.mxu0 0.0
        %1801 = vmatprep.subr.mxu0 0.0
        %1802 = vmatpush1.msra.mxu0 0.0
        %1803 = vmatprep.subr.mxu0 0.0
        %1804 = vmatpush1.msra.mxu0 0.0
        %1805 = vmatprep.subr.mxu0 0.0
        %1806 = vmatpush1.msra.mxu0 0.0
        %1807 = vmatprep.subr.mxu0 0.0
        %1808 = vmatpush1.msra.mxu0 0.0
        %1809 = vmatprep.subr.mxu0 0.0
        %1810 = vmatpush1.msra.mxu0 0.0
        %1811 = vmatprep.subr.mxu0 0.0
        %1812 = vmatpush1.msra.mxu0 0.0
        %1813 = vmatprep.subr.mxu0 0.0
        %1814 = vmatpush1.msra.mxu0 0.0
        %1815 = vmatprep.subr.mxu0 0.0
        %1816 = vmatpush1.msra.mxu0 0.0
        %1817 = vmatprep.mubr.f32.mxu0 0.0
        %1818 = vmatmul.mubr.f32.gmra.mrb[0].mxu0 %v1751
        %v1819 = vpop.f32.mrb[0].mxu0
        %v1820 = vadd.f32 0.0, %v1819
        %v1821 = vpop.f32.mrb[0].mxu0
        %1822 = vdwg.mxu0
        %v1823 = vadd.f32 %v1745, %v1820
        %s1824 = scalar_lea.vmem %s5, 24
        %v1825 = vld [vmem:[%s1824] sm:$0xff]
        %v1827 = vsel %vm958, %v1596, 0
        %1829 = vmatprep.subr.mxu0 0.0
        %1830 = vmatpush1.msra.mxu0 %v1825
        %1831 = vmatprep.subr.mxu0 0.0
        %1832 = vmatpush1.msra.mxu0 0.0
        %1833 = vmatprep.subr.mxu0 0.0
        %1834 = vmatpush1.msra.mxu0 0.0
        %1835 = vmatprep.subr.mxu0 0.0
        %1836 = vmatpush1.msra.mxu0 0.0
        %1837 = vmatprep.subr.mxu0 0.0
        %1838 = vmatpush1.msra.mxu0 0.0
        %1839 = vmatprep.subr.mxu0 0.0
        %1840 = vmatpush1.msra.mxu0 0.0
        %1841 = vmatprep.subr.mxu0 0.0
        %1842 = vmatpush1.msra.mxu0 0.0
        %1843 = vmatprep.subr.mxu0 0.0
        %1844 = vmatpush1.msra.mxu0 0.0
        %1845 = vmatprep.subr.mxu0 0.0
        %1846 = vmatpush1.msra.mxu0 0.0
        %1847 = vmatprep.subr.mxu0 0.0
        %1848 = vmatpush1.msra.mxu0 0.0
        %1849 = vmatprep.subr.mxu0 0.0
        %1850 = vmatpush1.msra.mxu0 0.0
        %1851 = vmatprep.subr.mxu0 0.0
        %1852 = vmatpush1.msra.mxu0 0.0
        %1853 = vmatprep.subr.mxu0 0.0
        %1854 = vmatpush1.msra.mxu0 0.0
        %1855 = vmatprep.subr.mxu0 0.0
        %1856 = vmatpush1.msra.mxu0 0.0
        %1857 = vmatprep.subr.mxu0 0.0
        %1858 = vmatpush1.msra.mxu0 0.0
        %1859 = vmatprep.subr.mxu0 0.0
        %1860 = vmatpush1.msra.mxu0 0.0
        %1861 = vmatprep.subr.mxu0 0.0
        %1862 = vmatpush1.msra.mxu0 0.0
        %1863 = vmatprep.subr.mxu0 0.0
        %1864 = vmatpush1.msra.mxu0 0.0
        %1865 = vmatprep.subr.mxu0 0.0
        %1866 = vmatpush1.msra.mxu0 0.0
        %1867 = vmatprep.subr.mxu0 0.0
        %1868 = vmatpush1.msra.mxu0 0.0
        %1869 = vmatprep.subr.mxu0 0.0
        %1870 = vmatpush1.msra.mxu0 0.0
        %1871 = vmatprep.subr.mxu0 0.0
        %1872 = vmatpush1.msra.mxu0 0.0
        %1873 = vmatprep.subr.mxu0 0.0
        %1874 = vmatpush1.msra.mxu0 0.0
        %1875 = vmatprep.subr.mxu0 0.0
        %1876 = vmatpush1.msra.mxu0 0.0
        %1877 = vmatprep.subr.mxu0 0.0
        %1878 = vmatpush1.msra.mxu0 0.0
        %1879 = vmatprep.subr.mxu0 0.0
        %1880 = vmatpush1.msra.mxu0 0.0
        %1881 = vmatprep.subr.mxu0 0.0
        %1882 = vmatpush1.msra.mxu0 0.0
        %1883 = vmatprep.subr.mxu0 0.0
        %1884 = vmatpush1.msra.mxu0 0.0
        %1885 = vmatprep.subr.mxu0 0.0
        %1886 = vmatpush1.msra.mxu0 0.0
        %1887 = vmatprep.subr.mxu0 0.0
        %1888 = vmatpush1.msra.mxu0 0.0
        %1889 = vmatprep.subr.mxu0 0.0
        %1890 = vmatpush1.msra.mxu0 0.0
        %1891 = vmatprep.subr.mxu0 0.0
        %1892 = vmatpush1.msra.mxu0 0.0
        %1893 = vmatprep.mubr.f32.mxu0 0.0
        %1894 = vmatmul.mubr.f32.gmra.mrb[0].mxu0 %v1827
        %v1895 = vpop.f32.mrb[0].mxu0
        %v1896 = vadd.f32 0.0, %v1895
        %v1897 = vpop.f32.mrb[0].mxu0
        %1898 = vdwg.mxu0
        %v1899 = vadd.f32 %v1823, %v1896
        %1901 = vset.pattern.permute.xlu0 0
        %1902 = vperm.xlu0 %1901, %v948
        %v1903 = vpop.permute.xlu0 %1902
        %v1905 = vmul.f32 %v1899, %v1903
        %v1906 = vlaneseq
        %v1907 = vshrl.u32 %v1906, 7
        %v1908 = vsub.s32 3, %v1907
        %v1909 = vrot.slane %v387, %v1908
        %v1910 = vadd.f32 %v1905, %v1909
        %v1911 = vadd.f32 %v386, %v1910
        %v1912 = vsel %vm393, %v1911, 0.0
        %1913 = vadd.xlane.f32.xlu0 %v1912
        %v1914 = vpop.xlane.xlu0 %1913
        %v1915 = vrcp.pop 32.0
        %v1916 = vmul.f32 %v1914, %v1915
        %v1917 = vsub.f32 %v1911, %v1916
        %v1918 = vmul.f32 %v1917, %v1917
        %v1919 = vsel %vm393, %v1918, 0.0
        %1920 = vadd.xlane.f32.xlu0 %v1919
        %v1921 = vpop.xlane.xlu0 %1920
        %v1922 = vmul.f32 %v1921, %v1915
        %v1923 = vadd.f32 %v1922, 1e-05
        %v1924 = vrsqrt.pop %v1923
        %v1925 = vmul.f32 %v1917, %v1924
        %v1926 = vlaneseq
        %v1927 = vshrl.u32 %v1926, 7
        %v1928 = vsub.s32 4, %v1927
        %v1929 = vrot.slane %v387, %v1928
        %v1930 = vmul.f32 %v1925, %v1929
        %v1931 = vlaneseq
        %v1932 = vshrl.u32 %v1931, 7
        %v1933 = vsub.s32 5, %v1932
        %v1934 = vrot.slane %v387, %v1933
        %v1935 = vadd.f32 %v1930, %v1934
        %v1936 = vld [vmem:[%s6] sm:$0xff]
        %v1937 = vld [vmem:[%s6 + $0x8] sm:$0xff]
        %v1938 = vld [vmem:[%s6 + $0x10] sm:$0xff]
        %v1939 = vld [vmem:[%s6 + $0x18] sm:$0xff]
        %v1940 = vld [vmem:[%s9] sm:$0x1]
        %v1942 = vlaneseq
        %v1943 = vshrl.u32 %v1942, 7
        %v1944 = vsub.s32 0, %v1943
        %v1945 = vrot.slane %v1940, %v1944
        %v1948 = vsel %vm393, %v1935, 0
        %1950 = vmatprep.subr.mxu0 0.0
        %1951 = vmatpush1.msra.mxu0 %v1936
        %1952 = vmatprep.subr.mxu0 0.0
        %1953 = vmatpush1.msra.mxu0 %v1937
        %1954 = vmatprep.subr.mxu0 0.0
        %1955 = vmatpush1.msra.mxu0 %v1938
        %1956 = vmatprep.subr.mxu0 0.0
        %1957 = vmatpush1.msra.mxu0 %v1939
        %1958 = vmatprep.subr.mxu0 0.0
        %1959 = vmatpush1.msra.mxu0 0.0
        %1960 = vmatprep.subr.mxu0 0.0
        %1961 = vmatpush1.msra.mxu0 0.0
        %1962 = vmatprep.subr.mxu0 0.0
        %1963 = vmatpush1.msra.mxu0 0.0
        %1964 = vmatprep.subr.mxu0 0.0
        %1965 = vmatpush1.msra.mxu0 0.0
        %1966 = vmatprep.subr.mxu0 0.0
        %1967 = vmatpush1.msra.mxu0 0.0
        %1968 = vmatprep.subr.mxu0 0.0
        %1969 = vmatpush1.msra.mxu0 0.0
        %1970 = vmatprep.subr.mxu0 0.0
        %1971 = vmatpush1.msra.mxu0 0.0
        %1972 = vmatprep.subr.mxu0 0.0
        %1973 = vmatpush1.msra.mxu0 0.0
        %1974 = vmatprep.subr.mxu0 0.0
        %1975 = vmatpush1.msra.mxu0 0.0
        %1976 = vmatprep.subr.mxu0 0.0
        %1977 = vmatpush1.msra.mxu0 0.0
        %1978 = vmatprep.subr.mxu0 0.0
        %1979 = vmatpush1.msra.mxu0 0.0
        %1980 = vmatprep.subr.mxu0 0.0
        %1981 = vmatpush1.msra.mxu0 0.0
        %1982 = vmatprep.subr.mxu0 0.0
        %1983 = vmatpush1.msra.mxu0 0.0
        %1984 = vmatprep.subr.mxu0 0.0
        %1985 = vmatpush1.msra.mxu0 0.0
        %1986 = vmatprep.subr.mxu0 0.0
        %1987 = vmatpush1.msra.mxu0 0.0
        %1988 = vmatprep.subr.mxu0 0.0
        %1989 = vmatpush1.msra.mxu0 0.0
        %1990 = vmatprep.subr.mxu0 0.0
        %1991 = vmatpush1.msra.mxu0 0.0
        %1992 = vmatprep.subr.mxu0 0.0
        %1993 = vmatpush1.msra.mxu0 0.0
        %1994 = vmatprep.subr.mxu0 0.0
        %1995 = vmatpush1.msra.mxu0 0.0
        %1996 = vmatprep.subr.mxu0 0.0
        %1997 = vmatpush1.msra.mxu0 0.0
        %1998 = vmatprep.subr.mxu0 0.0
        %1999 = vmatpush1.msra.mxu0 0.0
        %2000 = vmatprep.subr.mxu0 0.0
        %2001 = vmatpush1.msra.mxu0 0.0
        %2002 = vmatprep.subr.mxu0 0.0
        %2003 = vmatpush1.msra.mxu0 0.0
        %2004 = vmatprep.subr.mxu0 0.0
        %2005 = vmatpush1.msra.mxu0 0.0
        %2006 = vmatprep.subr.mxu0 0.0
        %2007 = vmatpush1.msra.mxu0 0.0
        %2008 = vmatprep.subr.mxu0 0.0
        %2009 = vmatpush1.msra.mxu0 0.0
        %2010 = vmatprep.subr.mxu0 0.0
        %2011 = vmatpush1.msra.mxu0 0.0
        %2012 = vmatprep.subr.mxu0 0.0
        %2013 = vmatpush1.msra.mxu0 0.0
        %2014 = vmatprep.mubr.f32.mxu0 0.0
        %2015 = vmatmul.mubr.f32.gmra.mrb[0].mxu0 %v1948
        %v2016 = vpop.f32.mrb[0].mxu0
        %v2017 = vadd.f32 %v1945, %v2016
        %v2018 = vpop.f32.mrb[0].mxu0
        %2019 = vdwg.mxu0
        %v2020 = vmul.f32 %v2017, 0.5
        %v2021 = vmul.f32 %v2017, 0.044715
        %v2022 = vmul.f32 %v2021, %v2017
        %v2023 = vmul.f32 %v2022, %v2017
        %v2024 = vadd.f32 %v2017, %v2023
        %v2025 = vmul.f32 %v2024, 0.7978846
        %v2026 = vtanh.pop %v2025
        %v2027 = vadd.f32 %v2026, 1.0
        %v2028 = vmul.f32 %v2020, %v2027
        %v2029 = vld [vmem:[%s7] sm:$0xff]
        %v2030 = vld [vmem:[%s7 + $0x8] sm:$0xff]
        %v2031 = vld [vmem:[%s7 + $0x10] sm:$0xff]
        %v2032 = vld [vmem:[%s7 + $0x18] sm:$0xff]
        %v2033 = vld [vmem:[%s7 + $0x20] sm:$0xff]
        %v2034 = vld [vmem:[%s7 + $0x28] sm:$0xff]
        %v2035 = vld [vmem:[%s7 + $0x30] sm:$0xff]
        %v2036 = vld [vmem:[%s7 + $0x38] sm:$0xff]
        %v2037 = vld [vmem:[%s7 + $0x40] sm:$0xff]
        %v2038 = vld [vmem:[%s7 + $0x48] sm:$0xff]
        %v2039 = vld [vmem:[%s7 + $0x50] sm:$0xff]
        %v2040 = vld [vmem:[%s7 + $0x58] sm:$0xff]
        %v2041 = vld [vmem:[%s7 + $0x60] sm:$0xff]
        %v2042 = vld [vmem:[%s7 + $0x68] sm:$0xff]
        %v2043 = vld [vmem:[%s7 + $0x70] sm:$0xff]
        %v2044 = vld [vmem:[%s7 + $0x78] sm:$0xff]
        %v2045 = vlaneseq
        %v2046 = vshrl.u32 %v2045, 7
        %v2047 = vsub.s32 6, %v2046
        %v2048 = vrot.slane %v387, %v2047
        %2049 = vmatprep.subr.mxu0 0.0
        %2050 = vmatpush1.msra.mxu0 %v2029
        %2051 = vmatprep.subr.mxu0 0.0
        %2052 = vmatpush1.msra.mxu0 %v2030
        %2053 = vmatprep.subr.mxu0 0.0
        %2054 = vmatpush1.msra.mxu0 %v2031
        %2055 = vmatprep.subr.mxu0 0.0
        %2056 = vmatpush1.msra.mxu0 %v2032
        %2057 = vmatprep.subr.mxu0 0.0
        %2058 = vmatpush1.msra.mxu0 %v2033
        %2059 = vmatprep.subr.mxu0 0.0
        %2060 = vmatpush1.msra.mxu0 %v2034
        %2061 = vmatprep.subr.mxu0 0.0
        %2062 = vmatpush1.msra.mxu0 %v2035
        %2063 = vmatprep.subr.mxu0 0.0
        %2064 = vmatpush1.msra.mxu0 %v2036
        %2065 = vmatprep.subr.mxu0 0.0
        %2066 = vmatpush1.msra.mxu0 %v2037
        %2067 = vmatprep.subr.mxu0 0.0
        %2068 = vmatpush1.msra.mxu0 %v2038
        %2069 = vmatprep.subr.mxu0 0.0
        %2070 = vmatpush1.msra.mxu0 %v2039
        %2071 = vmatprep.subr.mxu0 0.0
        %2072 = vmatpush1.msra.mxu0 %v2040
        %2073 = vmatprep.subr.mxu0 0.0
        %2074 = vmatpush1.msra.mxu0 %v2041
        %2075 = vmatprep.subr.mxu0 0.0
        %2076 = vmatpush1.msra.mxu0 %v2042
        %2077 = vmatprep.subr.mxu0 0.0
        %2078 = vmatpush1.msra.mxu0 %v2043
        %2079 = vmatprep.subr.mxu0 0.0
        %2080 = vmatpush1.msra.mxu0 %v2044
        %2081 = vmatprep.subr.mxu0 0.0
        %2082 = vmatpush1.msra.mxu0 0.0
        %2083 = vmatprep.subr.mxu0 0.0
        %2084 = vmatpush1.msra.mxu0 0.0
        %2085 = vmatprep.subr.mxu0 0.0
        %2086 = vmatpush1.msra.mxu0 0.0
        %2087 = vmatprep.subr.mxu0 0.0
        %2088 = vmatpush1.msra.mxu0 0.0
        %2089 = vmatprep.subr.mxu0 0.0
        %2090 = vmatpush1.msra.mxu0 0.0
        %2091 = vmatprep.subr.mxu0 0.0
        %2092 = vmatpush1.msra.mxu0 0.0
        %2093 = vmatprep.subr.mxu0 0.0
        %2094 = vmatpush1.msra.mxu0 0.0
        %2095 = vmatprep.subr.mxu0 0.0
        %2096 = vmatpush1.msra.mxu0 0.0
        %2097 = vmatprep.subr.mxu0 0.0
        %2098 = vmatpush1.msra.mxu0 0.0
        %2099 = vmatprep.subr.mxu0 0.0
        %2100 = vmatpush1.msra.mxu0 0.0
        %2101 = vmatprep.subr.mxu0 0.0
        %2102 = vmatpush1.msra.mxu0 0.0
        %2103 = vmatprep.subr.mxu0 0.0
        %2104 = vmatpush1.msra.mxu0 0.0
        %2105 = vmatprep.subr.mxu0 0.0
        %2106 = vmatpush1.msra.mxu0 0.0
        %2107 = vmatprep.subr.mxu0 0.0
        %2108 = vmatpush1.msra.mxu0 0.0
        %2109 = vmatprep.subr.mxu0 0.0
        %2110 = vmatpush1.msra.mxu0 0.0
        %2111 = vmatprep.subr.mxu0 0.0
        %2112 = vmatpush1.msra.mxu0 0.0
        %2113 = vmatprep.mubr.f32.mxu0 0.0
        %2114 = vmatmul.mubr.f32.gmra.mrb[0].mxu0 %v2028
        %v2115 = vpop.f32.mrb[0].mxu0
        %v2116 = vadd.f32 %v2048, %v2115
        %v2117 = vpop.f32.mrb[0].mxu0
        %2118 = vdwg.mxu0
        %v2119 = vadd.f32 %v1935, %v2116
        %v2120 = vsel %vm393, %v2119, 0.0
        %2121 = vadd.xlane.f32.xlu0 %v2120
        %v2122 = vpop.xlane.xlu0 %2121
        %v2123 = vmul.f32 %v2122, %v1915
        %v2124 = vsub.f32 %v2119, %v2123
        %v2125 = vmul.f32 %v2124, %v2124
        %v2126 = vsel %vm393, %v2125, 0.0
        %2127 = vadd.xlane.f32.xlu0 %v2126
        %v2128 = vpop.xlane.xlu0 %2127
        %v2129 = vmul.f32 %v2128, %v1915
        %v2130 = vadd.f32 %v2129, 1e-05
        %v2131 = vrsqrt.pop %v2130
        %v2132 = vmul.f32 %v2124, %v2131
        %v2133 = vlaneseq
        %v2134 = vshrl.u32 %v2133, 7
        %v2135 = vsub.s32 7, %v2134
        %v2136 = vrot.slane %v387, %v2135
        %v2137 = vmul.f32 %v2132, %v2136
        %v2138 = vlaneseq
        %v2139 = vshrl.u32 %v2138, 7
        %v2140 = vsub.s32 0, %v2139
        %v2141 = vrot.slane %v388, %v2140
        %v2142 = vadd.f32 %v2137, %v2141
        %2143 = vst.msk [vmem:[%s374] sm:$0xff] %vm393, %v2142
        %s2144 = sand.u32 %s257, 1
        %s2145 = scalar_lea.sflag [#allocation3], %s2144
        %s2146 = sand.u32 %s257, 1
        %s2147 = smul.addr %s2146, 8
        %s2148 = scalar_lea.vmem [#allocation2], %s2147
        // Predicated region
        $region61: #{tpu_custom_call.1} parent=59 // pred_check
          %p2149 = pneg %p267
        $region62: #{tpu_custom_call.1} parent=59 // pred_check_branch
          %2151 = sbr.rel (%p2149) target = $region64
        $region63: #{tpu_custom_call.1} parent=59 // pred_region
          %s2153 = ssub.s32 128, 128
          %2154 = vsyncadd %s2145, %s2153
          %s2155 = smul.addr %s24, 128
          %s2156 = scalar_lea.hbm %s10, %s2155
          %s2158 = sshll.u32 %s2148, 4
          %s2159 = int_to_ptr.vmem [resolvable:$true] %s2158
          %2161 = dma.vmem_to_hbm [thread:$0]  %s2159, 128, %s2156, %s2145
        $region64: #{tpu_custom_call.1} parent=59 // pred_fallthru
          _
      $region60: #{tpu_custom_call.1} parent=5 // pred_fallthru
        _
      %p2162 = scmp.le.s32.totalorder 2, %s19
      // Predicated region
      $region65: #{tpu_custom_call.1} parent=5 // pred_check
        %p2163 = pneg %p2162
      $region66: #{tpu_custom_call.1} parent=5 // pred_check_branch
        %2165 = sbr.rel (%p2163) target = $region68
      $region67: #{tpu_custom_call.1} parent=5 // pred_region
        %s2166 = ssub.s32 %s19, 2
        // Predicated region
        $region69: #{tpu_custom_call.1} parent=67 // pred_check
          %p2167 = pneg %p273
        $region70: #{tpu_custom_call.1} parent=67 // pred_check_branch
          %2169 = sbr.rel (%p2167) target = $region72
        $region71: #{tpu_custom_call.1} parent=67 // pred_region
          %s2170 = sand.u32 %s258, 1
          %s2171 = scalar_lea.sflag [#allocation3], %s2170
          %s2172 = sand.u32 %s258, 1
          %s2173 = smul.addr %s2172, 8
          %s2174 = scalar_lea.vmem [#allocation2], %s2173
          %2175 = dma.done %s2171, 128
        $region72: #{tpu_custom_call.1} parent=67 // pred_fallthru
          _
      $region68: #{tpu_custom_call.1} parent=5 // pred_fallthru
        _
    $region6: #{tpu_custom_call.1} parent=1 // loop_footer
      %s23 = sadd.s32 1, %s19
    $region7: #{tpu_custom_call.1} parent=1 // loop_footer_branch
      %18 = sbr.rel target = $region3
    $region8: #{tpu_custom_call.1} parent=1 // loop_exit
      _
    %2176 = vsyncpa [#allocation3], 1
    %s2177 = scalar_lea.sflag [#allocation3], 1
    %2178 = vsyncpa %s2177, 1

</llo_original>
